<compile_context>
chip_gen: v7x
topology: tpu7x:2x2x1
jax: 0.10.0
libtpu: 0.0.40
codegen_flags: <defaults>
</compile_context>

<pallas_src>
import functools

import jax
import jax.numpy as jnp
from jax.experimental import pallas as pl
from jax.experimental.pallas import tpu as pltpu


def _round_up(x: int, m: int) -> int:
    return (x + m - 1) // m * m


def _pad2d(a, rows, cols):
    return jnp.pad(a, ((0, rows - a.shape[0]), (0, cols - a.shape[1])))


# --------------------------------------------------------------------------
# Kernel 1: linear  T = X @ W + b   (bf16 MXU, f32 accumulate, bias in f32)
# --------------------------------------------------------------------------
def _linear_kernel(x_ref, w_ref, b_ref, o_ref, acc_ref):
    k = pl.program_id(1)
    is_last = k == pl.num_programs(1) - 1

    @pl.when(k == 0)
    def _():
        acc_ref[...] = jnp.zeros_like(acc_ref)

    acc_ref[...] += jnp.dot(x_ref[...], w_ref[...],
                            preferred_element_type=jnp.float32)

    @pl.when(is_last)
    def _():
        o_ref[...] = (acc_ref[...] + b_ref[...]).astype(o_ref.dtype)


def _linear_pallas(x_p, w_p, b_p, *, tb, out_dtype=jnp.bfloat16):
    """X_p [np_, cin_p] @ W_p [cin_p, cout_p] + b_p [1, cout_p] -> [np_, cout_p]."""
    np_, cin_p = x_p.shape
    cout_p = w_p.shape[1]

    # Keep the X tile double-buffer under ~8 MiB; tk stays a multiple of 128
    # and divides cin_p exactly.
    tk = cin_p
    while 2 * tb * tk * 2 > 8 * 1024 * 1024 and (tk // 2) % 128 == 0:
        tk //= 2

    grid = (np_ // tb, cin_p // tk)
    flops = 2 * np_ * cin_p * cout_p
    bytes_accessed = (x_p.size * 2 + w_p.size * 2 + b_p.size * 4
                      + np_ * cout_p * jnp.dtype(out_dtype).itemsize)

    return pl.pallas_call(
        _linear_kernel,
        out_shape=jax.ShapeDtypeStruct((np_, cout_p), out_dtype),
        grid_spec=pltpu.PrefetchScalarGridSpec(
            num_scalar_prefetch=0,
            grid=grid,
            in_specs=[
                pl.BlockSpec((tb, tk), lambda i, k: (i, k)),       # X row tile
                pl.BlockSpec((tk, cout_p), lambda i, k: (k, 0)),   # W k-slab
                pl.BlockSpec((1, cout_p), lambda i, k: (0, 0)),    # bias resident
            ],
            out_specs=pl.BlockSpec((tb, cout_p), lambda i, k: (i, 0)),
            scratch_shapes=[pltpu.VMEM((tb, cout_p), jnp.float32)],
        ),
        compiler_params=pltpu.CompilerParams(
            dimension_semantics=("parallel", "arbitrary"),
        ),
        cost_estimate=pl.CostEstimate(
            flops=int(flops), transcendentals=0,
            bytes_accessed=int(bytes_accessed)),
    )(x_p, w_p, b_p)


# --------------------------------------------------------------------------
# Kernel 2: aggregation  H = relu(G @ T) [* dropout_mask]
# --------------------------------------------------------------------------
def _make_agg_kernel(with_mask: bool):
    if with_mask:
        def kernel(g_ref, t_ref, m_ref, o_ref, acc_ref):
            k = pl.program_id(1)
            is_last = k == pl.num_programs(1) - 1

            @pl.when(k == 0)
            def _():
                acc_ref[...] = jnp.zeros_like(acc_ref)

            acc_ref[...] += jnp.dot(g_ref[...], t_ref[...],
                                    preferred_element_type=jnp.float32)

            @pl.when(is_last)
            def _():
                h = jnp.maximum(acc_ref[...], 0.0)          # ReLU in f32
                o_ref[...] = (h * m_ref[...]).astype(o_ref.dtype)
    else:
        def kernel(g_ref, t_ref, o_ref, acc_ref):
            k = pl.program_id(1)
            is_last = k == pl.num_programs(1) - 1

            @pl.when(k == 0)
            def _():
                acc_ref[...] = jnp.zeros_like(acc_ref)

            acc_ref[...] += jnp.dot(g_ref[...], t_ref[...],
                                    preferred_element_type=jnp.float32)

            @pl.when(is_last)
            def _():
                o_ref[...] = jnp.maximum(acc_ref[...], 0.0).astype(o_ref.dtype)
    return kernel


def _aggregate_pallas(g_p, t_p, mask_p, *, tb, out_dtype):
    """relu(G_p @ T_p) (* mask_p) with G_p [np_, np_] bf16, T_p [np_, cout_p] bf16."""
    np_ = g_p.shape[0]
    cout_p = t_p.shape[1]
    with_mask = mask_p is not None
    grid = (np_ // tb, np_ // tb)

    in_specs = [
        # G carries >90% of the bytes; its block index changes every step.
        # (If a profile shows exposed DMA at large tb, add
        #  pipeline_mode=pl.Buffered(3) here only.)
        pl.BlockSpec((tb, tb), lambda i, k: (i, k)),
        pl.BlockSpec((tb, cout_p), lambda i, k: (k, 0)),       # T reduction tile
    ]
    operands = [g_p, t_p]
    if with_mask:
        in_specs.append(pl.BlockSpec((tb, cout_p), lambda i, k: (i, 0)))
        operands.append(mask_p)

    out_bytes = jnp.dtype(out_dtype).itemsize
    # Conservative VMEM estimate: double-buffered inputs/output + accumulator.
    vmem_est = (2 * tb * tb * 2 + 2 * tb * cout_p * 2
                + 2 * tb * cout_p * out_bytes + tb * cout_p * 4
                + (2 * tb * cout_p * 4 if with_mask else 0))
    vmem_limit = None
    if vmem_est > 12 * 1024 * 1024:       # beyond the conservative scoped default
        vmem_limit = min(int(vmem_est * 3 // 2), 56 * 1024 * 1024)

    flops = 2 * np_ * np_ * cout_p
    bytes_accessed = (g_p.size * 2 + t_p.size * 2 * grid[0]
                      + np_ * cout_p * out_bytes
                      + (mask_p.size * 4 if with_mask else 0))

    return pl.pallas_call(
        _make_agg_kernel(with_mask),
        out_shape=jax.ShapeDtypeStruct((np_, cout_p), out_dtype),
        grid_spec=pltpu.PrefetchScalarGridSpec(
            num_scalar_prefetch=0,
            grid=grid,
            in_specs=in_specs,
            out_specs=pl.BlockSpec((tb, cout_p), lambda i, k: (i, 0)),
            scratch_shapes=[pltpu.VMEM((tb, cout_p), jnp.float32)],
        ),
        compiler_params=pltpu.CompilerParams(
            dimension_semantics=("parallel", "arbitrary"),
            vmem_limit_bytes=vmem_limit,
        ),
        cost_estimate=pl.CostEstimate(
            flops=int(flops), transcendentals=0,
            bytes_accessed=int(bytes_accessed)),
    )(*operands)


# --------------------------------------------------------------------------
# HGNN_embedding.forward
# --------------------------------------------------------------------------
@functools.partial(jax.jit, static_argnames=("dropout_rate", "seed", "block_rows"))
def hgnn_embedding_forward(x, g, w1, b1, w2, b2, *, dropout_rate=0.5, seed=0,
                           block_rows=1024):
    """relu(G@(x@W1+b1)) -> inverted dropout -> relu(G@(.@W2+b2))."""
    n, in_ch = x.shape
    n_hid = w1.shape[1]

    tb = min(block_rows, _round_up(n, 128))
    np_ = _round_up(n, tb)
    cin_p = _round_up(in_ch, 128)
    ch_p = _round_up(n_hid, 128)

    # Cast to bf16 BEFORE padding (no padded f32 copies); pad G exactly once
    # and share it between both layers. Zero-padded G rows/cols keep padded
    # nodes from leaking into real outputs.
    x_p = _pad2d(x.astype(jnp.bfloat16), np_, cin_p)
    g_p = _pad2d(g.astype(jnp.bfloat16), np_, np_)
    w1_p = _pad2d(w1.astype(jnp.bfloat16), cin_p, ch_p)
    w2_p = _pad2d(w2.astype(jnp.bfloat16), ch_p, ch_p)
    b1_p = jnp.pad(b1.astype(jnp.float32), (0, ch_p - n_hid)).reshape(1, ch_p)
    b2_p = jnp.pad(b2.astype(jnp.float32), (0, ch_p - n_hid)).reshape(1, ch_p)

    # Inverted dropout mask (F.dropout default training=True), generated once
    # with jax.random: reproducible and independent of tile size / padding.
    mask_p = None
    if dropout_rate > 0.0:
        keep = 1.0 - float(dropout_rate)
        keep_bits = jax.random.bernoulli(jax.random.PRNGKey(seed), p=keep,
                                         shape=(np_, ch_p))
        mask_p = keep_bits.astype(jnp.float32) * (1.0 / keep)

    # Layer 1: hoisted linear, then fused aggregation + ReLU + dropout.
    t1 = _linear_pallas(x_p, w1_p, b1_p, tb=tb, out_dtype=jnp.bfloat16)
    h1 = _aggregate_pallas(g_p, t1, mask_p, tb=tb, out_dtype=jnp.bfloat16)

    # Layer 2: no dropout, f32 final output.
    t2 = _linear_pallas(h1, w2_p, b2_p, tb=tb, out_dtype=jnp.bfloat16)
    h2 = _aggregate_pallas(g_p, t2, None, tb=tb, out_dtype=jnp.float32)

    return h2[:n, :n_hid]


if __name__ == "__main__":
    # Small shapes consistent with the module: N nodes, E hyperedges.
    N, E, in_ch, n_hid = 24, 12, 48, 32

    key = jax.random.PRNGKey(0)
    kx, kg, kw1, kb1, kw2, kb2 = jax.random.split(key, 6)

    x = jax.random.normal(kx, (N, in_ch), jnp.float32)

    # Simple row-normalized hypergraph propagation matrix G [N, N].
    inc = (jax.random.uniform(kg, (N, E)) > 0.6).astype(jnp.float32)
    adj = inc @ inc.T + jnp.eye(N, dtype=jnp.float32)
    G = adj / adj.sum(axis=1, keepdims=True)

    # HGNN_conv.reset_parameters: U(-1/sqrt(out_ft), 1/sqrt(out_ft)).
    stdv = 1.0 / (n_hid ** 0.5)
    w1 = jax.random.uniform(kw1, (in_ch, n_hid), jnp.float32, -stdv, stdv)
    b1 = jax.random.uniform(kb1, (n_hid,), jnp.float32, -stdv, stdv)
    w2 = jax.random.uniform(kw2, (n_hid, n_hid), jnp.float32, -stdv, stdv)
    b2 = jax.random.uniform(kb2, (n_hid,), jnp.float32, -stdv, stdv)

    # (1) Deterministic check (dropout disabled) against a plain-JAX reference
    #     with the same bf16-inputs / f32-accumulate policy.
    out = hgnn_embedding_forward(x, G, w1, b1, w2, b2, dropout_rate=0.0)
    out = jax.block_until_ready(out)

    def ref_forward(x, g, w1, b1, w2, b2):
        xb, gb = x.astype(jnp.bfloat16), g.astype(jnp.bfloat16)
        t1 = jnp.dot(xb, w1.astype(jnp.bfloat16),
                     preferred_element_type=jnp.float32) + b1
        h1 = jnp.maximum(
            jnp.dot(gb, t1.astype(jnp.bfloat16),
                    preferred_element_type=jnp.float32), 0.0)
        h1b = h1.astype(jnp.bfloat16)
        t2 = jnp.dot(h1b, w2.astype(jnp.bfloat16),
                     preferred_element_type=jnp.float32) + b2
        h2 = jnp.maximum(
            jnp.dot(gb, t2.astype(jnp.bfloat16),
                    preferred_element_type=jnp.float32), 0.0)
        return h2

    ref = ref_forward(x, G, w1, b1, w2, b2)
    assert out.shape == (N, n_hid)
    assert jnp.allclose(out, ref, atol=2e-3, rtol=2e-3), "mismatch vs reference"

    # (2) Exercise the stochastic-dropout path (F.dropout training=True).
    out_do = hgnn_embedding_forward(x, G, w1, b1, w2, b2,
                                    dropout_rate=0.5, seed=123)
    out_do = jax.block_until_ready(out_do)
    assert out_do.shape == (N, n_hid)
    assert bool(jnp.all(jnp.isfinite(out_do)))

    print("KERNEL_OK")
</pallas_src>

<mosaic_0001>
module attributes {stable_mosaic.version = 11 : i64} {
  func.func @kernel(%arg0: i32, %arg1: i32, %arg2: memref<128x128xbf16, #tpu.memory_space<vmem>>, %arg3: memref<128x128xbf16, #tpu.memory_space<vmem>>, %arg4: memref<128x128xbf16, #tpu.memory_space<vmem>>, %arg5: memref<128x128xf32, #tpu.memory_space<vmem>>) attributes {dimension_semantics = [#tpu.dimension_semantics<parallel>, #tpu.dimension_semantics<arbitrary>], iteration_bounds = array<i64: 1, 1>, scalar_prefetch = 0 : i64, scratch_operands = 1 : i64, tpu.core_type = #tpu.core_type<tc>, window_params = [{transform_indices = @transform_0, window_bounds = array<i64: 128, 128>}, {transform_indices = @transform_1, window_bounds = array<i64: 128, 128>}, {transform_indices = @transform_2, window_bounds = array<i64: 128, 128>}]} {
    %c0_i32 = arith.constant 0 : i32
    %0 = arith.cmpi eq, %arg1, %c0_i32 : i32
    %c0_i32_0 = arith.constant 0 : i32
    %1 = arith.cmpi eq, %arg1, %c0_i32_0 : i32
    %2 = arith.extui %1 : i1 to i32
    %c0_i32_1 = arith.constant 0 : i32
    %3 = arith.cmpi ne, %2, %c0_i32_1 : i32
    scf.if %3 {
      %cst_10 = arith.constant 0.000000e+00 : f32
      %12 = vector.broadcast %cst_10 : f32 to vector<128x128xf32>
      %c0_11 = arith.constant 0 : index
      %c0_12 = arith.constant 0 : index
      %13 = vector.load %arg5[%c0_11, %c0_12] : memref<128x128xf32, #tpu.memory_space<vmem>>, vector<128x128xf32>
      tpu.vector_store %arg5[%c0_11, %c0_12], %12 {strides = array<i32>} : memref<128x128xf32, #tpu.memory_space<vmem>>, vector<128x128xf32>,
    } else {
    }
    %c0 = arith.constant 0 : index
    %c0_2 = arith.constant 0 : index
    %4 = vector.load %arg5[%c0, %c0_2] : memref<128x128xf32, #tpu.memory_space<vmem>>, vector<128x128xf32>
    %c0_3 = arith.constant 0 : index
    %c0_4 = arith.constant 0 : index
    %5 = vector.load %arg2[%c0_3, %c0_4] : memref<128x128xbf16, #tpu.memory_space<vmem>>, vector<128x128xbf16>
    %c0_5 = arith.constant 0 : index
    %c0_6 = arith.constant 0 : index
    %6 = vector.load %arg3[%c0_5, %c0_6] : memref<128x128xbf16, #tpu.memory_space<vmem>>, vector<128x128xbf16>
    %cst = arith.constant dense<0.000000e+00> : vector<128x128xf32>
    %7 = tpu.matmul %5, %6, %cst {dimension_numbers = #tpu.dot_dimension_numbers<[1], [0], [0], [1], [0, 0, 1, 1], [], []>} : vector<128x128xbf16>, vector<128x128xbf16>, vector<128x128xf32> -> vector<128x128xf32>
    %8 = arith.addf %4, %7 : vector<128x128xf32>
    %c0_7 = arith.constant 0 : index
    %c0_8 = arith.constant 0 : index
    %9 = vector.load %arg5[%c0_7, %c0_8] : memref<128x128xf32, #tpu.memory_space<vmem>>, vector<128x128xf32>
    tpu.vector_store %arg5[%c0_7, %c0_8], %8 {strides = array<i32>} : memref<128x128xf32, #tpu.memory_space<vmem>>, vector<128x128xf32>,
    %10 = arith.extui %0 : i1 to i32
    %c0_i32_9 = arith.constant 0 : i32
    %11 = arith.cmpi ne, %10, %c0_i32_9 : i32
    scf.if %11 {
      %c0_10 = arith.constant 0 : index
      %c0_11 = arith.constant 0 : index
      %12 = vector.load %arg5[%c0_10, %c0_11] : memref<128x128xf32, #tpu.memory_space<vmem>>, vector<128x128xf32>
      %cst_12 = arith.constant 0.000000e+00 : f32
      %13 = vector.broadcast %cst_12 : f32 to vector<128x128xf32>
      %14 = arith.maximumf %12, %13 : vector<128x128xf32>
      %15 = arith.truncf %14 : vector<128x128xf32> to vector<128x128xbf16>
      %c0_13 = arith.constant 0 : index
      %c0_14 = arith.constant 0 : index
      %16 = vector.load %arg4[%c0_13, %c0_14] : memref<128x128xbf16, #tpu.memory_space<vmem>>, vector<128x128xbf16>
      tpu.vector_store %arg4[%c0_13, %c0_14], %15 {strides = array<i32>} : memref<128x128xbf16, #tpu.memory_space<vmem>>, vector<128x128xbf16>,
    } else {
    }
    return
  }
  func.func @transform_0(%arg0: i32, %arg1: i32) -> (i32, i32) {
    %c0_i32 = arith.constant 0 : i32
    return %arg0, %arg1 : i32, i32
  }
  func.func @transform_1(%arg0: i32, %arg1: i32) -> (i32, i32) {
    %c0_i32 = arith.constant 0 : i32
    %c0_i32_0 = arith.constant 0 : i32
    return %arg1, %c0_i32 : i32, i32
  }
  func.func @transform_2(%arg0: i32, %arg1: i32) -> (i32, i32) {
    %c0_i32 = arith.constant 0 : i32
    %c0_i32_0 = arith.constant 0 : i32
    return %arg0, %c0_i32 : i32, i32
  }
}

module attributes {stable_mosaic.version = 11 : i64} {
  func.func @kernel(%arg0: i32, %arg1: i32, %arg2: memref<128x128xbf16, #tpu.memory_space<vmem>>, %arg3: memref<128x128xbf16, #tpu.memory_space<vmem>>, %arg4: memref<128x128xf32, #tpu.memory_space<vmem>>, %arg5: memref<128x128xf32, #tpu.memory_space<vmem>>) attributes {dimension_semantics = [#tpu.dimension_semantics<parallel>, #tpu.dimension_semantics<arbitrary>], iteration_bounds = array<i64: 1, 1>, scalar_prefetch = 0 : i64, scratch_operands = 1 : i64, tpu.core_type = #tpu.core_type<tc>, window_params = [{transform_indices = @transform_0, window_bounds = array<i64: 128, 128>}, {transform_indices = @transform_1, window_bounds = array<i64: 128, 128>}, {transform_indices = @transform_2, window_bounds = array<i64: 128, 128>}]} {
    %c0_i32 = arith.constant 0 : i32
    %0 = arith.cmpi eq, %arg1, %c0_i32 : i32
    %c0_i32_0 = arith.constant 0 : i32
    %1 = arith.cmpi eq, %arg1, %c0_i32_0 : i32
    %2 = arith.extui %1 : i1 to i32
    %c0_i32_1 = arith.constant 0 : i32
    %3 = arith.cmpi ne, %2, %c0_i32_1 : i32
    scf.if %3 {
      %cst_10 = arith.constant 0.000000e+00 : f32
      %12 = vector.broadcast %cst_10 : f32 to vector<128x128xf32>
      %c0_11 = arith.constant 0 : index
      %c0_12 = arith.constant 0 : index
      %13 = vector.load %arg5[%c0_11, %c0_12] : memref<128x128xf32, #tpu.memory_space<vmem>>, vector<128x128xf32>
      tpu.vector_store %arg5[%c0_11, %c0_12], %12 {strides = array<i32>} : memref<128x128xf32, #tpu.memory_space<vmem>>, vector<128x128xf32>,
    } else {
    }
    %c0 = arith.constant 0 : index
    %c0_2 = arith.constant 0 : index
    %4 = vector.load %arg5[%c0, %c0_2] : memref<128x128xf32, #tpu.memory_space<vmem>>, vector<128x128xf32>
    %c0_3 = arith.constant 0 : index
    %c0_4 = arith.constant 0 : index
    %5 = vector.load %arg2[%c0_3, %c0_4] : memref<128x128xbf16, #tpu.memory_space<vmem>>, vector<128x128xbf16>
    %c0_5 = arith.constant 0 : index
    %c0_6 = arith.constant 0 : index
    %6 = vector.load %arg3[%c0_5, %c0_6] : memref<128x128xbf16, #tpu.memory_space<vmem>>, vector<128x128xbf16>
    %cst = arith.constant dense<0.000000e+00> : vector<128x128xf32>
    %7 = tpu.matmul %5, %6, %cst {dimension_numbers = #tpu.dot_dimension_numbers<[1], [0], [0], [1], [0, 0, 1, 1], [], []>} : vector<128x128xbf16>, vector<128x128xbf16>, vector<128x128xf32> -> vector<128x128xf32>
    %8 = arith.addf %4, %7 : vector<128x128xf32>
    %c0_7 = arith.constant 0 : index
    %c0_8 = arith.constant 0 : index
    %9 = vector.load %arg5[%c0_7, %c0_8] : memref<128x128xf32, #tpu.memory_space<vmem>>, vector<128x128xf32>
    tpu.vector_store %arg5[%c0_7, %c0_8], %8 {strides = array<i32>} : memref<128x128xf32, #tpu.memory_space<vmem>>, vector<128x128xf32>,
    %10 = arith.extui %0 : i1 to i32
    %c0_i32_9 = arith.constant 0 : i32
    %11 = arith.cmpi ne, %10, %c0_i32_9 : i32
    scf.if %11 {
      %c0_10 = arith.constant 0 : index
      %c0_11 = arith.constant 0 : index
      %12 = vector.load %arg5[%c0_10, %c0_11] : memref<128x128xf32, #tpu.memory_space<vmem>>, vector<128x128xf32>
      %cst_12 = arith.constant 0.000000e+00 : f32
      %13 = vector.broadcast %cst_12 : f32 to vector<128x128xf32>
      %14 = arith.maximumf %12, %13 : vector<128x128xf32>
      %c0_13 = arith.constant 0 : index
      %c0_14 = arith.constant 0 : index
      %15 = vector.load %arg4[%c0_13, %c0_14] : memref<128x128xf32, #tpu.memory_space<vmem>>, vector<128x128xf32>
      tpu.vector_store %arg4[%c0_13, %c0_14], %14 {strides = array<i32>} : memref<128x128xf32, #tpu.memory_space<vmem>>, vector<128x128xf32>,
    } else {
    }
    return
  }
  func.func @transform_0(%arg0: i32, %arg1: i32) -> (i32, i32) {
    %c0_i32 = arith.constant 0 : i32
    return %arg0, %arg1 : i32, i32
  }
  func.func @transform_1(%arg0: i32, %arg1: i32) -> (i32, i32) {
    %c0_i32 = arith.constant 0 : i32
    %c0_i32_0 = arith.constant 0 : i32
    return %arg1, %c0_i32 : i32, i32
  }
  func.func @transform_2(%arg0: i32, %arg1: i32) -> (i32, i32) {
    %c0_i32 = arith.constant 0 : i32
    %c0_i32_0 = arith.constant 0 : i32
    return %arg0, %c0_i32 : i32, i32
  }
}

module attributes {stable_mosaic.version = 11 : i64} {
  func.func @_linear_kernel(%arg0: i32, %arg1: i32, %arg2: memref<128x128xbf16, #tpu.memory_space<vmem>>, %arg3: memref<128x128xbf16, #tpu.memory_space<vmem>>, %arg4: memref<1x128xf32, #tpu.memory_space<vmem>>, %arg5: memref<128x128xbf16, #tpu.memory_space<vmem>>, %arg6: memref<128x128xf32, #tpu.memory_space<vmem>>) attributes {dimension_semantics = [#tpu.dimension_semantics<parallel>, #tpu.dimension_semantics<arbitrary>], iteration_bounds = array<i64: 1, 1>, scalar_prefetch = 0 : i64, scratch_operands = 1 : i64, tpu.core_type = #tpu.core_type<tc>, window_params = [{transform_indices = @transform_0, window_bounds = array<i64: 128, 128>}, {transform_indices = @transform_1, window_bounds = array<i64: 128, 128>}, {pipeline_mode = #tpu.pipeline_mode<synchronous>, transform_indices = @transform_2, window_bounds = array<i64: 1, 128>}, {transform_indices = @transform_3, window_bounds = array<i64: 128, 128>}]} {
    %c0_i32 = arith.constant 0 : i32
    %0 = arith.cmpi eq, %arg1, %c0_i32 : i32
    %c0_i32_0 = arith.constant 0 : i32
    %1 = arith.cmpi eq, %arg1, %c0_i32_0 : i32
    %2 = arith.extui %1 : i1 to i32
    %c0_i32_1 = arith.constant 0 : i32
    %3 = arith.cmpi ne, %2, %c0_i32_1 : i32
    scf.if %3 {
      %cst_10 = arith.constant 0.000000e+00 : f32
      %12 = vector.broadcast %cst_10 : f32 to vector<128x128xf32>
      %c0_11 = arith.constant 0 : index
      %c0_12 = arith.constant 0 : index
      %13 = vector.load %arg6[%c0_11, %c0_12] : memref<128x128xf32, #tpu.memory_space<vmem>>, vector<128x128xf32>
      tpu.vector_store %arg6[%c0_11, %c0_12], %12 {strides = array<i32>} : memref<128x128xf32, #tpu.memory_space<vmem>>, vector<128x128xf32>,
    } else {
    }
    %c0 = arith.constant 0 : index
    %c0_2 = arith.constant 0 : index
    %4 = vector.load %arg6[%c0, %c0_2] : memref<128x128xf32, #tpu.memory_space<vmem>>, vector<128x128xf32>
    %c0_3 = arith.constant 0 : index
    %c0_4 = arith.constant 0 : index
    %5 = vector.load %arg2[%c0_3, %c0_4] : memref<128x128xbf16, #tpu.memory_space<vmem>>, vector<128x128xbf16>
    %c0_5 = arith.constant 0 : index
    %c0_6 = arith.constant 0 : index
    %6 = vector.load %arg3[%c0_5, %c0_6] : memref<128x128xbf16, #tpu.memory_space<vmem>>, vector<128x128xbf16>
    %cst = arith.constant dense<0.000000e+00> : vector<128x128xf32>
    %7 = tpu.matmul %5, %6, %cst {dimension_numbers = #tpu.dot_dimension_numbers<[1], [0], [0], [1], [0, 0, 1, 1], [], []>} : vector<128x128xbf16>, vector<128x128xbf16>, vector<128x128xf32> -> vector<128x128xf32>
    %8 = arith.addf %4, %7 : vector<128x128xf32>
    %c0_7 = arith.constant 0 : index
    %c0_8 = arith.constant 0 : index
    %9 = vector.load %arg6[%c0_7, %c0_8] : memref<128x128xf32, #tpu.memory_space<vmem>>, vector<128x128xf32>
    tpu.vector_store %arg6[%c0_7, %c0_8], %8 {strides = array<i32>} : memref<128x128xf32, #tpu.memory_space<vmem>>, vector<128x128xf32>,
    %10 = arith.extui %0 : i1 to i32
    %c0_i32_9 = arith.constant 0 : i32
    %11 = arith.cmpi ne, %10, %c0_i32_9 : i32
    scf.if %11 {
      %c0_10 = arith.constant 0 : index
      %c0_11 = arith.constant 0 : index
      %12 = vector.load %arg6[%c0_10, %c0_11] : memref<128x128xf32, #tpu.memory_space<vmem>>, vector<128x128xf32>
      %c0_12 = arith.constant 0 : index
      %c0_13 = arith.constant 0 : index
      %13 = vector.load %arg4[%c0_12, %c0_13] : memref<1x128xf32, #tpu.memory_space<vmem>>, vector<1x128xf32>
      %14 = vector.broadcast %13 : vector<1x128xf32> to vector<128x128xf32>
      %15 = arith.addf %12, %14 : vector<128x128xf32>
      %16 = arith.truncf %15 : vector<128x128xf32> to vector<128x128xbf16>
      %c0_14 = arith.constant 0 : index
      %c0_15 = arith.constant 0 : index
      %17 = vector.load %arg5[%c0_14, %c0_15] : memref<128x128xbf16, #tpu.memory_space<vmem>>, vector<128x128xbf16>
      tpu.vector_store %arg5[%c0_14, %c0_15], %16 {strides = array<i32>} : memref<128x128xbf16, #tpu.memory_space<vmem>>, vector<128x128xbf16>,
    } else {
    }
    return
  }
  func.func @transform_0(%arg0: i32, %arg1: i32) -> (i32, i32) {
    %c0_i32 = arith.constant 0 : i32
    return %arg0, %arg1 : i32, i32
  }
  func.func @transform_1(%arg0: i32, %arg1: i32) -> (i32, i32) {
    %c0_i32 = arith.constant 0 : i32
    %c0_i32_0 = arith.constant 0 : i32
    return %arg1, %c0_i32 : i32, i32
  }
  func.func @transform_2(%arg0: i32, %arg1: i32) -> (i32, i32) {
    %c0_i32 = arith.constant 0 : i32
    %c0_i32_0 = arith.constant 0 : i32
    %c0_i32_1 = arith.constant 0 : i32
    return %c0_i32, %c0_i32_0 : i32, i32
  }
  func.func @transform_3(%arg0: i32, %arg1: i32) -> (i32, i32) {
    %c0_i32 = arith.constant 0 : i32
    %c0_i32_0 = arith.constant 0 : i32
    return %arg0, %c0_i32 : i32, i32
  }
}

</mosaic_0001>

<llo_original>
// kernel: hgnn_embedding_forward.5
$region0: #{hgnn_embedding_forward.5}
  #allocation0 [shape = 'u32[]', space=smem, size = 0x4, offset = 0x4, fixed_abs, tag = 'smem constant byte address 0x4 - core index']
  #allocation1 [shape = 'u32[144,128]{1,0:T(1,128)}', space=vmem, size = 0x12000, scoped, tag = 'internal scratch']
  #allocation2 [shape = 'f32[128,128]{1,0:T(8,128)}', space=vmem, size = 0x10000, scoped, tag = 'scratch operand']
  %s0 = inlined_call_operand.vmem [shape: bf16[128,128], index: 0, kind: input, shape index: {}]
  %s1 = inlined_call_operand.vmem [shape: bf16[128,128], index: 1, kind: input, shape index: {}]
  %s2 = inlined_call_operand.vmem [shape: bf16[128,128], index: 2, kind: output, shape index: {}]
  %s3 = sld [smem:[#allocation0]]
  $region26: #{hgnn_embedding_forward.5} parent=0
    _
  %s5 = ssub.s32 1, %s3
  %s6 = scalar_select 0, %s5, %s3
  // Predicated region
  $region2: #{hgnn_embedding_forward.5} parent=0 // pred_check
    _
  $region3: #{hgnn_embedding_forward.5} parent=0 // pred_check_branch
    %8 = sbr.rel (0) target = $region5
  $region4: #{hgnn_embedding_forward.5} parent=0 // pred_region
    _
  $region5: #{hgnn_embedding_forward.5} parent=0 // pred_fallthru
    _
  // Predicated region
  $region6: #{hgnn_embedding_forward.5} parent=0 // pred_check
    _
  $region7: #{hgnn_embedding_forward.5} parent=0 // pred_check_branch
    %10 = sbr.rel (0) target = $region9
  $region8: #{hgnn_embedding_forward.5} parent=0 // pred_region
    _
  $region9: #{hgnn_embedding_forward.5} parent=0 // pred_fallthru
    _
  %p12 = scmp.eq.s32.totalorder 0, 0
  // Predicated region
  $region10: #{hgnn_embedding_forward.5} parent=0 // pred_check
    %p13 = pneg %p12
  $region11: #{hgnn_embedding_forward.5} parent=0 // pred_check_branch
    %15 = sbr.rel (%p13) target = $region13
  $region12: #{hgnn_embedding_forward.5} parent=0 // pred_region
    %16 = vst [vmem:[#allocation2] sm:$0xff] 0.0
    %17 = vst [vmem:[#allocation2 + $0x8] sm:$0xff] 0.0
    %18 = vst [vmem:[#allocation2 + $0x10] sm:$0xff] 0.0
    %19 = vst [vmem:[#allocation2 + $0x18] sm:$0xff] 0.0
    %20 = vst [vmem:[#allocation2 + $0x20] sm:$0xff] 0.0
    %21 = vst [vmem:[#allocation2 + $0x28] sm:$0xff] 0.0
    %22 = vst [vmem:[#allocation2 + $0x30] sm:$0xff] 0.0
    %23 = vst [vmem:[#allocation2 + $0x38] sm:$0xff] 0.0
    %24 = vst [vmem:[#allocation2 + $0x40] sm:$0xff] 0.0
    %25 = vst [vmem:[#allocation2 + $0x48] sm:$0xff] 0.0
    %26 = vst [vmem:[#allocation2 + $0x50] sm:$0xff] 0.0
    %27 = vst [vmem:[#allocation2 + $0x58] sm:$0xff] 0.0
    %28 = vst [vmem:[#allocation2 + $0x60] sm:$0xff] 0.0
    %29 = vst [vmem:[#allocation2 + $0x68] sm:$0xff] 0.0
    %30 = vst [vmem:[#allocation2 + $0x70] sm:$0xff] 0.0
    %31 = vst [vmem:[#allocation2 + $0x78] sm:$0xff] 0.0
  $region13: #{hgnn_embedding_forward.5} parent=0 // pred_fallthru
    _
  %v32 = vld [vmem:[#allocation2] sm:$0xff]
  %v33 = vld [vmem:[#allocation2 + $0x8] sm:$0xff]
  %v34 = vld [vmem:[#allocation2 + $0x10] sm:$0xff]
  %v35 = vld [vmem:[#allocation2 + $0x18] sm:$0xff]
  %v36 = vld [vmem:[#allocation2 + $0x20] sm:$0xff]
  %v37 = vld [vmem:[#allocation2 + $0x28] sm:$0xff]
  %v38 = vld [vmem:[#allocation2 + $0x30] sm:$0xff]
  %v39 = vld [vmem:[#allocation2 + $0x38] sm:$0xff]
  %v40 = vld [vmem:[#allocation2 + $0x40] sm:$0xff]
  %v41 = vld [vmem:[#allocation2 + $0x48] sm:$0xff]
  %v42 = vld [vmem:[#allocation2 + $0x50] sm:$0xff]
  %v43 = vld [vmem:[#allocation2 + $0x58] sm:$0xff]
  %v44 = vld [vmem:[#allocation2 + $0x60] sm:$0xff]
  %v45 = vld [vmem:[#allocation2 + $0x68] sm:$0xff]
  %v46 = vld [vmem:[#allocation2 + $0x70] sm:$0xff]
  %v47 = vld [vmem:[#allocation2 + $0x78] sm:$0xff]
  %v48 = vld [vmem:[%s0] sm:$0xf]
  %v49 = vld [vmem:[%s0 + $0x4] sm:$0xf]
  %v50 = vld [vmem:[%s0 + $0x8] sm:$0xf]
  %v51 = vld [vmem:[%s0 + $0xc] sm:$0xf]
  %v52 = vld [vmem:[%s0 + $0x10] sm:$0xf]
  %v53 = vld [vmem:[%s0 + $0x14] sm:$0xf]
  %v54 = vld [vmem:[%s0 + $0x18] sm:$0xf]
  %v55 = vld [vmem:[%s0 + $0x1c] sm:$0xf]
  %v56 = vld [vmem:[%s0 + $0x20] sm:$0xf]
  %v57 = vld [vmem:[%s0 + $0x24] sm:$0xf]
  %v58 = vld [vmem:[%s0 + $0x28] sm:$0xf]
  %v59 = vld [vmem:[%s0 + $0x2c] sm:$0xf]
  %v60 = vld [vmem:[%s0 + $0x30] sm:$0xf]
  %v61 = vld [vmem:[%s0 + $0x34] sm:$0xf]
  %v62 = vld [vmem:[%s0 + $0x38] sm:$0xf]
  %v63 = vld [vmem:[%s0 + $0x3c] sm:$0xf]
  %v64 = vld [vmem:[%s1] sm:$0xf]
  %v65 = vld [vmem:[%s1 + $0x4] sm:$0xf]
  %v66 = vld [vmem:[%s1 + $0x8] sm:$0xf]
  %v67 = vld [vmem:[%s1 + $0xc] sm:$0xf]
  %v68 = vld [vmem:[%s1 + $0x10] sm:$0xf]
  %v69 = vld [vmem:[%s1 + $0x14] sm:$0xf]
  %v70 = vld [vmem:[%s1 + $0x18] sm:$0xf]
  %v71 = vld [vmem:[%s1 + $0x1c] sm:$0xf]
  %v72 = vld [vmem:[%s1 + $0x20] sm:$0xf]
  %v73 = vld [vmem:[%s1 + $0x24] sm:$0xf]
  %v74 = vld [vmem:[%s1 + $0x28] sm:$0xf]
  %v75 = vld [vmem:[%s1 + $0x2c] sm:$0xf]
  %v76 = vld [vmem:[%s1 + $0x30] sm:$0xf]
  %v77 = vld [vmem:[%s1 + $0x34] sm:$0xf]
  %v78 = vld [vmem:[%s1 + $0x38] sm:$0xf]
  %v79 = vld [vmem:[%s1 + $0x3c] sm:$0xf]
  %v96 = vunpack.c.l.b16 %v48
  %v97 = vunpack.c.l.b16 %v49
  %v98 = vunpack.c.l.b16 %v50
  %v99 = vunpack.c.l.b16 %v51
  %v100 = vunpack.c.l.b16 %v52
  %v101 = vunpack.c.l.b16 %v53
  %v102 = vunpack.c.l.b16 %v54
  %v103 = vunpack.c.l.b16 %v55
  %v104 = vunpack.c.l.b16 %v56
  %v105 = vunpack.c.l.b16 %v57
  %v106 = vunpack.c.l.b16 %v58
  %v107 = vunpack.c.l.b16 %v59
  %v108 = vunpack.c.l.b16 %v60
  %v109 = vunpack.c.l.b16 %v61
  %v110 = vunpack.c.l.b16 %v62
  %v111 = vunpack.c.l.b16 %v63
  %v112 = vpack.c.b16 %v97, %v96
  %v113 = vpack.c.b16 %v99, %v98
  %v114 = vpack.c.b16 %v101, %v100
  %v115 = vpack.c.b16 %v103, %v102
  %v116 = vpack.c.b16 %v105, %v104
  %v117 = vpack.c.b16 %v107, %v106
  %v118 = vpack.c.b16 %v109, %v108
  %v119 = vpack.c.b16 %v111, %v110
  %v144 = vunpack.c.l.b16 %v64
  %v145 = vunpack.c.l.b16 %v65
  %v146 = vunpack.c.l.b16 %v66
  %v147 = vunpack.c.l.b16 %v67
  %v148 = vunpack.c.l.b16 %v68
  %v149 = vunpack.c.l.b16 %v69
  %v150 = vunpack.c.l.b16 %v70
  %v151 = vunpack.c.l.b16 %v71
  %v152 = vunpack.c.l.b16 %v72
  %v153 = vunpack.c.l.b16 %v73
  %v154 = vunpack.c.l.b16 %v74
  %v155 = vunpack.c.l.b16 %v75
  %v156 = vunpack.c.l.b16 %v76
  %v157 = vunpack.c.l.b16 %v77
  %v158 = vunpack.c.l.b16 %v78
  %v159 = vunpack.c.l.b16 %v79
  %v160 = vpack.c.b16 %v145, %v144
  %v161 = vpack.c.b16 %v147, %v146
  %v162 = vpack.c.b16 %v149, %v148
  %v163 = vpack.c.b16 %v151, %v150
  %v164 = vpack.c.b16 %v153, %v152
  %v165 = vpack.c.b16 %v155, %v154
  %v166 = vpack.c.b16 %v157, %v156
  %v167 = vpack.c.b16 %v159, %v158
  %176 = vmatprep.subr.bf16.mxu0 0
  %177 = vmatpush1.bf16.msra.mxu0 %v160
  %178 = vmatprep.subr.bf16.mxu0 0
  %179 = vmatpush1.bf16.msra.mxu0 %v161
  %180 = vmatprep.subr.bf16.mxu0 0
  %181 = vmatpush1.bf16.msra.mxu0 %v162
  %182 = vmatprep.subr.bf16.mxu0 0
  %183 = vmatpush1.bf16.msra.mxu0 %v163
  %184 = vmatprep.subr.bf16.mxu0 0
  %185 = vmatpush1.bf16.msra.mxu0 %v164
  %186 = vmatprep.subr.bf16.mxu0 0
  %187 = vmatpush1.bf16.msra.mxu0 %v165
  %188 = vmatprep.subr.bf16.mxu0 0
  %189 = vmatpush1.bf16.msra.mxu0 %v166
  %190 = vmatprep.subr.bf16.mxu0 0
  %191 = vmatpush1.bf16.msra.mxu0 %v167
  %192 = vmatprep.subr.bf16.mxu0 0
  %193 = vmatpush1.bf16.msra.mxu0 0
  %194 = vmatprep.subr.bf16.mxu0 0
  %195 = vmatpush1.bf16.msra.mxu0 0
  %196 = vmatprep.subr.bf16.mxu0 0
  %197 = vmatpush1.bf16.msra.mxu0 0
  %198 = vmatprep.subr.bf16.mxu0 0
  %199 = vmatpush1.bf16.msra.mxu0 0
  %200 = vmatprep.subr.bf16.mxu0 0
  %201 = vmatpush1.bf16.msra.mxu0 0
  %202 = vmatprep.subr.bf16.mxu0 0
  %203 = vmatpush1.bf16.msra.mxu0 0
  %204 = vmatprep.subr.bf16.mxu0 0
  %205 = vmatpush1.bf16.msra.mxu0 0
  %206 = vmatprep.subr.bf16.mxu0 0
  %207 = vmatpush1.bf16.msra.mxu0 0
  %208 = vmatprep.mubr.bf16.mxu0 0
  %209 = vmatmul.mubr.bf16.gmra.mrb[0].mxu0 %v112
  %v210 = vpop.f32.mrb[0].mxu0
  %v211 = vadd.f32 0.0, %v210
  %v212 = vpop.f32.mrb[0].mxu0
  %v213 = vpop.f32.mrb[0].mxu0
  %v214 = vadd.f32 0.0, %v213
  %v215 = vpop.f32.mrb[0].mxu0
  %216 = vmatprep.mubr.bf16.mxu0 0
  %217 = vmatmul.mubr.bf16.gmra.mrb[0].mxu0 %v113
  %v218 = vpop.f32.mrb[0].mxu0
  %v219 = vadd.f32 0.0, %v218
  %v220 = vpop.f32.mrb[0].mxu0
  %v221 = vpop.f32.mrb[0].mxu0
  %v222 = vadd.f32 0.0, %v221
  %v223 = vpop.f32.mrb[0].mxu0
  %224 = vmatprep.mubr.bf16.mxu0 0
  %225 = vmatmul.mubr.bf16.gmra.mrb[0].mxu0 %v114
  %v226 = vpop.f32.mrb[0].mxu0
  %v227 = vadd.f32 0.0, %v226
  %v228 = vpop.f32.mrb[0].mxu0
  %v229 = vpop.f32.mrb[0].mxu0
  %v230 = vadd.f32 0.0, %v229
  %v231 = vpop.f32.mrb[0].mxu0
  %232 = vmatprep.mubr.bf16.mxu0 0
  %233 = vmatmul.mubr.bf16.gmra.mrb[0].mxu0 %v115
  %v234 = vpop.f32.mrb[0].mxu0
  %v235 = vadd.f32 0.0, %v234
  %v236 = vpop.f32.mrb[0].mxu0
  %v237 = vpop.f32.mrb[0].mxu0
  %v238 = vadd.f32 0.0, %v237
  %v239 = vpop.f32.mrb[0].mxu0
  %240 = vmatprep.mubr.bf16.mxu0 0
  %241 = vmatmul.mubr.bf16.gmra.mrb[0].mxu0 %v116
  %v242 = vpop.f32.mrb[0].mxu0
  %v243 = vadd.f32 0.0, %v242
  %v244 = vpop.f32.mrb[0].mxu0
  %v245 = vpop.f32.mrb[0].mxu0
  %v246 = vadd.f32 0.0, %v245
  %v247 = vpop.f32.mrb[0].mxu0
  %248 = vmatprep.mubr.bf16.mxu0 0
  %249 = vmatmul.mubr.bf16.gmra.mrb[0].mxu0 %v117
  %v250 = vpop.f32.mrb[0].mxu0
  %v251 = vadd.f32 0.0, %v250
  %v252 = vpop.f32.mrb[0].mxu0
  %v253 = vpop.f32.mrb[0].mxu0
  %v254 = vadd.f32 0.0, %v253
  %v255 = vpop.f32.mrb[0].mxu0
  %256 = vmatprep.mubr.bf16.mxu0 0
  %257 = vmatmul.mubr.bf16.gmra.mrb[0].mxu0 %v118
  %v258 = vpop.f32.mrb[0].mxu0
  %v259 = vadd.f32 0.0, %v258
  %v260 = vpop.f32.mrb[0].mxu0
  %v261 = vpop.f32.mrb[0].mxu0
  %v262 = vadd.f32 0.0, %v261
  %v263 = vpop.f32.mrb[0].mxu0
  %264 = vmatprep.mubr.bf16.mxu0 0
  %265 = vmatmul.mubr.bf16.gmra.mrb[0].mxu0 %v119
  %v266 = vpop.f32.mrb[0].mxu0
  %v267 = vadd.f32 0.0, %v266
  %v268 = vpop.f32.mrb[0].mxu0
  %v269 = vpop.f32.mrb[0].mxu0
  %v270 = vadd.f32 0.0, %v269
  %v271 = vpop.f32.mrb[0].mxu0
  %272 = vdwg.mxu0
  %v273 = vadd.f32 %v32, %v211
  %v274 = vadd.f32 %v33, %v214
  %v275 = vadd.f32 %v34, %v219
  %v276 = vadd.f32 %v35, %v222
  %v277 = vadd.f32 %v36, %v227
  %v278 = vadd.f32 %v37, %v230
  %v279 = vadd.f32 %v38, %v235
  %v280 = vadd.f32 %v39, %v238
  %v281 = vadd.f32 %v40, %v243
  %v282 = vadd.f32 %v41, %v246
  %v283 = vadd.f32 %v42, %v251
  %v284 = vadd.f32 %v43, %v254
  %v285 = vadd.f32 %v44, %v259
  %v286 = vadd.f32 %v45, %v262
  %v287 = vadd.f32 %v46, %v267
  %v288 = vadd.f32 %v47, %v270
  %289 = vst [vmem:[#allocation2] sm:$0xff] %v273
  %290 = vst [vmem:[#allocation2 + $0x8] sm:$0xff] %v274
  %291 = vst [vmem:[#allocation2 + $0x10] sm:$0xff] %v275
  %292 = vst [vmem:[#allocation2 + $0x18] sm:$0xff] %v276
  %293 = vst [vmem:[#allocation2 + $0x20] sm:$0xff] %v277
  %294 = vst [vmem:[#allocation2 + $0x28] sm:$0xff] %v278
  %295 = vst [vmem:[#allocation2 + $0x30] sm:$0xff] %v279
  %296 = vst [vmem:[#allocation2 + $0x38] sm:$0xff] %v280
  %297 = vst [vmem:[#allocation2 + $0x40] sm:$0xff] %v281
  %298 = vst [vmem:[#allocation2 + $0x48] sm:$0xff] %v282
  %299 = vst [vmem:[#allocation2 + $0x50] sm:$0xff] %v283
  %300 = vst [vmem:[#allocation2 + $0x58] sm:$0xff] %v284
  %301 = vst [vmem:[#allocation2 + $0x60] sm:$0xff] %v285
  %302 = vst [vmem:[#allocation2 + $0x68] sm:$0xff] %v286
  %303 = vst [vmem:[#allocation2 + $0x70] sm:$0xff] %v287
  %304 = vst [vmem:[#allocation2 + $0x78] sm:$0xff] %v288
  // Predicated region
  $region14: #{hgnn_embedding_forward.5} parent=0 // pred_check
    %p305 = pneg %p12
  $region15: #{hgnn_embedding_forward.5} parent=0 // pred_check_branch
    %307 = sbr.rel (%p305) target = $region17
  $region16: #{hgnn_embedding_forward.5} parent=0 // pred_region
    %v308 = vld [vmem:[#allocation2] sm:$0xff]
    %v309 = vld [vmem:[#allocation2 + $0x8] sm:$0xff]
    %v310 = vld [vmem:[#allocation2 + $0x10] sm:$0xff]
    %v311 = vld [vmem:[#allocation2 + $0x18] sm:$0xff]
    %v312 = vld [vmem:[#allocation2 + $0x20] sm:$0xff]
    %v313 = vld [vmem:[#allocation2 + $0x28] sm:$0xff]
    %v314 = vld [vmem:[#allocation2 + $0x30] sm:$0xff]
    %v315 = vld [vmem:[#allocation2 + $0x38] sm:$0xff]
    %v316 = vld [vmem:[#allocation2 + $0x40] sm:$0xff]
    %v317 = vld [vmem:[#allocation2 + $0x48] sm:$0xff]
    %v318 = vld [vmem:[#allocation2 + $0x50] sm:$0xff]
    %v319 = vld [vmem:[#allocation2 + $0x58] sm:$0xff]
    %v320 = vld [vmem:[#allocation2 + $0x60] sm:$0xff]
    %v321 = vld [vmem:[#allocation2 + $0x68] sm:$0xff]
    %v322 = vld [vmem:[#allocation2 + $0x70] sm:$0xff]
    %v323 = vld [vmem:[#allocation2 + $0x78] sm:$0xff]
    %v324 = vmax.f32 %v308, 0.0
    %v325 = vmax.f32 %v309, 0.0
    %v326 = vmax.f32 %v310, 0.0
    %v327 = vmax.f32 %v311, 0.0
    %v328 = vmax.f32 %v312, 0.0
    %v329 = vmax.f32 %v313, 0.0
    %v330 = vmax.f32 %v314, 0.0
    %v331 = vmax.f32 %v315, 0.0
    %v332 = vmax.f32 %v316, 0.0
    %v333 = vmax.f32 %v317, 0.0
    %v334 = vmax.f32 %v318, 0.0
    %v335 = vmax.f32 %v319, 0.0
    %v336 = vmax.f32 %v320, 0.0
    %v337 = vmax.f32 %v321, 0.0
    %v338 = vmax.f32 %v322, 0.0
    %v339 = vmax.f32 %v323, 0.0
    %v340 = vpack.c.bf16 %v325, %v324
    %v341 = vpack.c.bf16 %v327, %v326
    %v342 = vpack.c.bf16 %v329, %v328
    %v343 = vpack.c.bf16 %v331, %v330
    %v344 = vpack.c.bf16 %v333, %v332
    %v345 = vpack.c.bf16 %v335, %v334
    %v346 = vpack.c.bf16 %v337, %v336
    %v347 = vpack.c.bf16 %v339, %v338
    %v356 = vunpack.c.l.b16 %v340
    %v357 = vunpack.c.h.b16 %v340
    %v358 = vunpack.c.l.b16 %v341
    %v359 = vunpack.c.h.b16 %v341
    %v360 = vunpack.c.l.b16 %v342
    %v361 = vunpack.c.h.b16 %v342
    %v362 = vunpack.c.l.b16 %v343
    %v363 = vunpack.c.h.b16 %v343
    %v364 = vunpack.c.l.b16 %v344
    %v365 = vunpack.c.h.b16 %v344
    %v366 = vunpack.c.l.b16 %v345
    %v367 = vunpack.c.h.b16 %v345
    %v368 = vunpack.c.l.b16 %v346
    %v369 = vunpack.c.h.b16 %v346
    %v370 = vunpack.c.l.b16 %v347
    %v371 = vunpack.c.h.b16 %v347
    %v372 = vpack.c.b16 %v356, %v356
    %v373 = vpack.c.b16 %v357, %v357
    %v374 = vpack.c.b16 %v358, %v358
    %v375 = vpack.c.b16 %v359, %v359
    %v376 = vpack.c.b16 %v360, %v360
    %v377 = vpack.c.b16 %v361, %v361
    %v378 = vpack.c.b16 %v362, %v362
    %v379 = vpack.c.b16 %v363, %v363
    %v380 = vpack.c.b16 %v364, %v364
    %v381 = vpack.c.b16 %v365, %v365
    %v382 = vpack.c.b16 %v366, %v366
    %v383 = vpack.c.b16 %v367, %v367
    %v384 = vpack.c.b16 %v368, %v368
    %v385 = vpack.c.b16 %v369, %v369
    %v386 = vpack.c.b16 %v370, %v370
    %v387 = vpack.c.b16 %v371, %v371
    %404 = vst [vmem:[%s2] sm:$0xf] %v372
    %405 = vst [vmem:[%s2 + $0x4] sm:$0xf] %v373
    %406 = vst [vmem:[%s2 + $0x8] sm:$0xf] %v374
    %407 = vst [vmem:[%s2 + $0xc] sm:$0xf] %v375
    %408 = vst [vmem:[%s2 + $0x10] sm:$0xf] %v376
    %409 = vst [vmem:[%s2 + $0x14] sm:$0xf] %v377
    %410 = vst [vmem:[%s2 + $0x18] sm:$0xf] %v378
    %411 = vst [vmem:[%s2 + $0x1c] sm:$0xf] %v379
    %412 = vst [vmem:[%s2 + $0x20] sm:$0xf] %v380
    %413 = vst [vmem:[%s2 + $0x24] sm:$0xf] %v381
    %414 = vst [vmem:[%s2 + $0x28] sm:$0xf] %v382
    %415 = vst [vmem:[%s2 + $0x2c] sm:$0xf] %v383
    %416 = vst [vmem:[%s2 + $0x30] sm:$0xf] %v384
    %417 = vst [vmem:[%s2 + $0x34] sm:$0xf] %v385
    %418 = vst [vmem:[%s2 + $0x38] sm:$0xf] %v386
    %419 = vst [vmem:[%s2 + $0x3c] sm:$0xf] %v387
  $region17: #{hgnn_embedding_forward.5} parent=0 // pred_fallthru
    _
  // Predicated region
  $region18: #{hgnn_embedding_forward.5} parent=0 // pred_check
    _
  $region19: #{hgnn_embedding_forward.5} parent=0 // pred_check_branch
    %421 = sbr.rel (0) target = $region21
  $region20: #{hgnn_embedding_forward.5} parent=0 // pred_region
    _
  $region21: #{hgnn_embedding_forward.5} parent=0 // pred_fallthru
    _
  // Predicated region
  $region22: #{hgnn_embedding_forward.5} parent=0 // pred_check
    _
  $region23: #{hgnn_embedding_forward.5} parent=0 // pred_check_branch
    %423 = sbr.rel (0) target = $region25
  $region24: #{hgnn_embedding_forward.5} parent=0 // pred_region
    _
  $region25: #{hgnn_embedding_forward.5} parent=0 // pred_fallthru
    _

// kernel: hgnn_embedding_forward.7
$region0: #{hgnn_embedding_forward.7}
  #allocation0 [shape = 'u32[]', space=smem, size = 0x4, offset = 0x4, fixed_abs, tag = 'smem constant byte address 0x4 - core index']
  #allocation1 [shape = 'u32[144,128]{1,0:T(1,128)}', space=vmem, size = 0x12000, scoped, tag = 'internal scratch']
  #allocation2 [shape = 'f32[128,128]{1,0:T(8,128)}', space=vmem, size = 0x10000, scoped, tag = 'scratch operand']
  %s0 = inlined_call_operand.vmem [shape: bf16[128,128], index: 0, kind: input, shape index: {}]
  %s1 = inlined_call_operand.vmem [shape: bf16[128,128], index: 1, kind: input, shape index: {}]
  %s2 = inlined_call_operand.vmem [shape: f32[128,128], index: 2, kind: output, shape index: {}]
  %s3 = sld [smem:[#allocation0]]
  $region26: #{hgnn_embedding_forward.7} parent=0
    _
  %s5 = ssub.s32 1, %s3
  %s6 = scalar_select 0, %s5, %s3
  // Predicated region
  $region2: #{hgnn_embedding_forward.7} parent=0 // pred_check
    _
  $region3: #{hgnn_embedding_forward.7} parent=0 // pred_check_branch
    %8 = sbr.rel (0) target = $region5
  $region4: #{hgnn_embedding_forward.7} parent=0 // pred_region
    _
  $region5: #{hgnn_embedding_forward.7} parent=0 // pred_fallthru
    _
  // Predicated region
  $region6: #{hgnn_embedding_forward.7} parent=0 // pred_check
    _
  $region7: #{hgnn_embedding_forward.7} parent=0 // pred_check_branch
    %10 = sbr.rel (0) target = $region9
  $region8: #{hgnn_embedding_forward.7} parent=0 // pred_region
    _
  $region9: #{hgnn_embedding_forward.7} parent=0 // pred_fallthru
    _
  %p12 = scmp.eq.s32.totalorder 0, 0
  // Predicated region
  $region10: #{hgnn_embedding_forward.7} parent=0 // pred_check
    %p13 = pneg %p12
  $region11: #{hgnn_embedding_forward.7} parent=0 // pred_check_branch
    %15 = sbr.rel (%p13) target = $region13
  $region12: #{hgnn_embedding_forward.7} parent=0 // pred_region
    %16 = vst [vmem:[#allocation2] sm:$0xff] 0.0
    %17 = vst [vmem:[#allocation2 + $0x8] sm:$0xff] 0.0
    %18 = vst [vmem:[#allocation2 + $0x10] sm:$0xff] 0.0
    %19 = vst [vmem:[#allocation2 + $0x18] sm:$0xff] 0.0
    %20 = vst [vmem:[#allocation2 + $0x20] sm:$0xff] 0.0
    %21 = vst [vmem:[#allocation2 + $0x28] sm:$0xff] 0.0
    %22 = vst [vmem:[#allocation2 + $0x30] sm:$0xff] 0.0
    %23 = vst [vmem:[#allocation2 + $0x38] sm:$0xff] 0.0
    %24 = vst [vmem:[#allocation2 + $0x40] sm:$0xff] 0.0
    %25 = vst [vmem:[#allocation2 + $0x48] sm:$0xff] 0.0
    %26 = vst [vmem:[#allocation2 + $0x50] sm:$0xff] 0.0
    %27 = vst [vmem:[#allocation2 + $0x58] sm:$0xff] 0.0
    %28 = vst [vmem:[#allocation2 + $0x60] sm:$0xff] 0.0
    %29 = vst [vmem:[#allocation2 + $0x68] sm:$0xff] 0.0
    %30 = vst [vmem:[#allocation2 + $0x70] sm:$0xff] 0.0
    %31 = vst [vmem:[#allocation2 + $0x78] sm:$0xff] 0.0
  $region13: #{hgnn_embedding_forward.7} parent=0 // pred_fallthru
    _
  %v32 = vld [vmem:[#allocation2] sm:$0xff]
  %v33 = vld [vmem:[#allocation2 + $0x8] sm:$0xff]
  %v34 = vld [vmem:[#allocation2 + $0x10] sm:$0xff]
  %v35 = vld [vmem:[#allocation2 + $0x18] sm:$0xff]
  %v36 = vld [vmem:[#allocation2 + $0x20] sm:$0xff]
  %v37 = vld [vmem:[#allocation2 + $0x28] sm:$0xff]
  %v38 = vld [vmem:[#allocation2 + $0x30] sm:$0xff]
  %v39 = vld [vmem:[#allocation2 + $0x38] sm:$0xff]
  %v40 = vld [vmem:[#allocation2 + $0x40] sm:$0xff]
  %v41 = vld [vmem:[#allocation2 + $0x48] sm:$0xff]
  %v42 = vld [vmem:[#allocation2 + $0x50] sm:$0xff]
  %v43 = vld [vmem:[#allocation2 + $0x58] sm:$0xff]
  %v44 = vld [vmem:[#allocation2 + $0x60] sm:$0xff]
  %v45 = vld [vmem:[#allocation2 + $0x68] sm:$0xff]
  %v46 = vld [vmem:[#allocation2 + $0x70] sm:$0xff]
  %v47 = vld [vmem:[#allocation2 + $0x78] sm:$0xff]
  %v48 = vld [vmem:[%s0] sm:$0xf]
  %v49 = vld [vmem:[%s0 + $0x4] sm:$0xf]
  %v50 = vld [vmem:[%s0 + $0x8] sm:$0xf]
  %v51 = vld [vmem:[%s0 + $0xc] sm:$0xf]
  %v52 = vld [vmem:[%s0 + $0x10] sm:$0xf]
  %v53 = vld [vmem:[%s0 + $0x14] sm:$0xf]
  %v54 = vld [vmem:[%s0 + $0x18] sm:$0xf]
  %v55 = vld [vmem:[%s0 + $0x1c] sm:$0xf]
  %v56 = vld [vmem:[%s0 + $0x20] sm:$0xf]
  %v57 = vld [vmem:[%s0 + $0x24] sm:$0xf]
  %v58 = vld [vmem:[%s0 + $0x28] sm:$0xf]
  %v59 = vld [vmem:[%s0 + $0x2c] sm:$0xf]
  %v60 = vld [vmem:[%s0 + $0x30] sm:$0xf]
  %v61 = vld [vmem:[%s0 + $0x34] sm:$0xf]
  %v62 = vld [vmem:[%s0 + $0x38] sm:$0xf]
  %v63 = vld [vmem:[%s0 + $0x3c] sm:$0xf]
  %v64 = vld [vmem:[%s1] sm:$0xf]
  %v65 = vld [vmem:[%s1 + $0x4] sm:$0xf]
  %v66 = vld [vmem:[%s1 + $0x8] sm:$0xf]
  %v67 = vld [vmem:[%s1 + $0xc] sm:$0xf]
  %v68 = vld [vmem:[%s1 + $0x10] sm:$0xf]
  %v69 = vld [vmem:[%s1 + $0x14] sm:$0xf]
  %v70 = vld [vmem:[%s1 + $0x18] sm:$0xf]
  %v71 = vld [vmem:[%s1 + $0x1c] sm:$0xf]
  %v72 = vld [vmem:[%s1 + $0x20] sm:$0xf]
  %v73 = vld [vmem:[%s1 + $0x24] sm:$0xf]
  %v74 = vld [vmem:[%s1 + $0x28] sm:$0xf]
  %v75 = vld [vmem:[%s1 + $0x2c] sm:$0xf]
  %v76 = vld [vmem:[%s1 + $0x30] sm:$0xf]
  %v77 = vld [vmem:[%s1 + $0x34] sm:$0xf]
  %v78 = vld [vmem:[%s1 + $0x38] sm:$0xf]
  %v79 = vld [vmem:[%s1 + $0x3c] sm:$0xf]
  %v96 = vunpack.c.l.b16 %v48
  %v97 = vunpack.c.l.b16 %v49
  %v98 = vunpack.c.l.b16 %v50
  %v99 = vunpack.c.l.b16 %v51
  %v100 = vunpack.c.l.b16 %v52
  %v101 = vunpack.c.l.b16 %v53
  %v102 = vunpack.c.l.b16 %v54
  %v103 = vunpack.c.l.b16 %v55
  %v104 = vunpack.c.l.b16 %v56
  %v105 = vunpack.c.l.b16 %v57
  %v106 = vunpack.c.l.b16 %v58
  %v107 = vunpack.c.l.b16 %v59
  %v108 = vunpack.c.l.b16 %v60
  %v109 = vunpack.c.l.b16 %v61
  %v110 = vunpack.c.l.b16 %v62
  %v111 = vunpack.c.l.b16 %v63
  %v112 = vpack.c.b16 %v97, %v96
  %v113 = vpack.c.b16 %v99, %v98
  %v114 = vpack.c.b16 %v101, %v100
  %v115 = vpack.c.b16 %v103, %v102
  %v116 = vpack.c.b16 %v105, %v104
  %v117 = vpack.c.b16 %v107, %v106
  %v118 = vpack.c.b16 %v109, %v108
  %v119 = vpack.c.b16 %v111, %v110
  %v144 = vunpack.c.l.b16 %v64
  %v145 = vunpack.c.l.b16 %v65
  %v146 = vunpack.c.l.b16 %v66
  %v147 = vunpack.c.l.b16 %v67
  %v148 = vunpack.c.l.b16 %v68
  %v149 = vunpack.c.l.b16 %v69
  %v150 = vunpack.c.l.b16 %v70
  %v151 = vunpack.c.l.b16 %v71
  %v152 = vunpack.c.l.b16 %v72
  %v153 = vunpack.c.l.b16 %v73
  %v154 = vunpack.c.l.b16 %v74
  %v155 = vunpack.c.l.b16 %v75
  %v156 = vunpack.c.l.b16 %v76
  %v157 = vunpack.c.l.b16 %v77
  %v158 = vunpack.c.l.b16 %v78
  %v159 = vunpack.c.l.b16 %v79
  %v160 = vpack.c.b16 %v145, %v144
  %v161 = vpack.c.b16 %v147, %v146
  %v162 = vpack.c.b16 %v149, %v148
  %v163 = vpack.c.b16 %v151, %v150
  %v164 = vpack.c.b16 %v153, %v152
  %v165 = vpack.c.b16 %v155, %v154
  %v166 = vpack.c.b16 %v157, %v156
  %v167 = vpack.c.b16 %v159, %v158
  %176 = vmatprep.subr.bf16.mxu0 0
  %177 = vmatpush1.bf16.msra.mxu0 %v160
  %178 = vmatprep.subr.bf16.mxu0 0
  %179 = vmatpush1.bf16.msra.mxu0 %v161
  %180 = vmatprep.subr.bf16.mxu0 0
  %181 = vmatpush1.bf16.msra.mxu0 %v162
  %182 = vmatprep.subr.bf16.mxu0 0
  %183 = vmatpush1.bf16.msra.mxu0 %v163
  %184 = vmatprep.subr.bf16.mxu0 0
  %185 = vmatpush1.bf16.msra.mxu0 %v164
  %186 = vmatprep.subr.bf16.mxu0 0
  %187 = vmatpush1.bf16.msra.mxu0 %v165
  %188 = vmatprep.subr.bf16.mxu0 0
  %189 = vmatpush1.bf16.msra.mxu0 %v166
  %190 = vmatprep.subr.bf16.mxu0 0
  %191 = vmatpush1.bf16.msra.mxu0 %v167
  %192 = vmatprep.subr.bf16.mxu0 0
  %193 = vmatpush1.bf16.msra.mxu0 0
  %194 = vmatprep.subr.bf16.mxu0 0
  %195 = vmatpush1.bf16.msra.mxu0 0
  %196 = vmatprep.subr.bf16.mxu0 0
  %197 = vmatpush1.bf16.msra.mxu0 0
  %198 = vmatprep.subr.bf16.mxu0 0
  %199 = vmatpush1.bf16.msra.mxu0 0
  %200 = vmatprep.subr.bf16.mxu0 0
  %201 = vmatpush1.bf16.msra.mxu0 0
  %202 = vmatprep.subr.bf16.mxu0 0
  %203 = vmatpush1.bf16.msra.mxu0 0
  %204 = vmatprep.subr.bf16.mxu0 0
  %205 = vmatpush1.bf16.msra.mxu0 0
  %206 = vmatprep.subr.bf16.mxu0 0
  %207 = vmatpush1.bf16.msra.mxu0 0
  %208 = vmatprep.mubr.bf16.mxu0 0
  %209 = vmatmul.mubr.bf16.gmra.mrb[0].mxu0 %v112
  %v210 = vpop.f32.mrb[0].mxu0
  %v211 = vadd.f32 0.0, %v210
  %v212 = vpop.f32.mrb[0].mxu0
  %v213 = vpop.f32.mrb[0].mxu0
  %v214 = vadd.f32 0.0, %v213
  %v215 = vpop.f32.mrb[0].mxu0
  %216 = vmatprep.mubr.bf16.mxu0 0
  %217 = vmatmul.mubr.bf16.gmra.mrb[0].mxu0 %v113
  %v218 = vpop.f32.mrb[0].mxu0
  %v219 = vadd.f32 0.0, %v218
  %v220 = vpop.f32.mrb[0].mxu0
  %v221 = vpop.f32.mrb[0].mxu0
  %v222 = vadd.f32 0.0, %v221
  %v223 = vpop.f32.mrb[0].mxu0
  %224 = vmatprep.mubr.bf16.mxu0 0
  %225 = vmatmul.mubr.bf16.gmra.mrb[0].mxu0 %v114
  %v226 = vpop.f32.mrb[0].mxu0
  %v227 = vadd.f32 0.0, %v226
  %v228 = vpop.f32.mrb[0].mxu0
  %v229 = vpop.f32.mrb[0].mxu0
  %v230 = vadd.f32 0.0, %v229
  %v231 = vpop.f32.mrb[0].mxu0
  %232 = vmatprep.mubr.bf16.mxu0 0
  %233 = vmatmul.mubr.bf16.gmra.mrb[0].mxu0 %v115
  %v234 = vpop.f32.mrb[0].mxu0
  %v235 = vadd.f32 0.0, %v234
  %v236 = vpop.f32.mrb[0].mxu0
  %v237 = vpop.f32.mrb[0].mxu0
  %v238 = vadd.f32 0.0, %v237
  %v239 = vpop.f32.mrb[0].mxu0
  %240 = vmatprep.mubr.bf16.mxu0 0
  %241 = vmatmul.mubr.bf16.gmra.mrb[0].mxu0 %v116
  %v242 = vpop.f32.mrb[0].mxu0
  %v243 = vadd.f32 0.0, %v242
  %v244 = vpop.f32.mrb[0].mxu0
  %v245 = vpop.f32.mrb[0].mxu0
  %v246 = vadd.f32 0.0, %v245
  %v247 = vpop.f32.mrb[0].mxu0
  %248 = vmatprep.mubr.bf16.mxu0 0
  %249 = vmatmul.mubr.bf16.gmra.mrb[0].mxu0 %v117
  %v250 = vpop.f32.mrb[0].mxu0
  %v251 = vadd.f32 0.0, %v250
  %v252 = vpop.f32.mrb[0].mxu0
  %v253 = vpop.f32.mrb[0].mxu0
  %v254 = vadd.f32 0.0, %v253
  %v255 = vpop.f32.mrb[0].mxu0
  %256 = vmatprep.mubr.bf16.mxu0 0
  %257 = vmatmul.mubr.bf16.gmra.mrb[0].mxu0 %v118
  %v258 = vpop.f32.mrb[0].mxu0
  %v259 = vadd.f32 0.0, %v258
  %v260 = vpop.f32.mrb[0].mxu0
  %v261 = vpop.f32.mrb[0].mxu0
  %v262 = vadd.f32 0.0, %v261
  %v263 = vpop.f32.mrb[0].mxu0
  %264 = vmatprep.mubr.bf16.mxu0 0
  %265 = vmatmul.mubr.bf16.gmra.mrb[0].mxu0 %v119
  %v266 = vpop.f32.mrb[0].mxu0
  %v267 = vadd.f32 0.0, %v266
  %v268 = vpop.f32.mrb[0].mxu0
  %v269 = vpop.f32.mrb[0].mxu0
  %v270 = vadd.f32 0.0, %v269
  %v271 = vpop.f32.mrb[0].mxu0
  %272 = vdwg.mxu0
  %v273 = vadd.f32 %v32, %v211
  %v274 = vadd.f32 %v33, %v214
  %v275 = vadd.f32 %v34, %v219
  %v276 = vadd.f32 %v35, %v222
  %v277 = vadd.f32 %v36, %v227
  %v278 = vadd.f32 %v37, %v230
  %v279 = vadd.f32 %v38, %v235
  %v280 = vadd.f32 %v39, %v238
  %v281 = vadd.f32 %v40, %v243
  %v282 = vadd.f32 %v41, %v246
  %v283 = vadd.f32 %v42, %v251
  %v284 = vadd.f32 %v43, %v254
  %v285 = vadd.f32 %v44, %v259
  %v286 = vadd.f32 %v45, %v262
  %v287 = vadd.f32 %v46, %v267
  %v288 = vadd.f32 %v47, %v270
  %289 = vst [vmem:[#allocation2] sm:$0xff] %v273
  %290 = vst [vmem:[#allocation2 + $0x8] sm:$0xff] %v274
  %291 = vst [vmem:[#allocation2 + $0x10] sm:$0xff] %v275
  %292 = vst [vmem:[#allocation2 + $0x18] sm:$0xff] %v276
  %293 = vst [vmem:[#allocation2 + $0x20] sm:$0xff] %v277
  %294 = vst [vmem:[#allocation2 + $0x28] sm:$0xff] %v278
  %295 = vst [vmem:[#allocation2 + $0x30] sm:$0xff] %v279
  %296 = vst [vmem:[#allocation2 + $0x38] sm:$0xff] %v280
  %297 = vst [vmem:[#allocation2 + $0x40] sm:$0xff] %v281
  %298 = vst [vmem:[#allocation2 + $0x48] sm:$0xff] %v282
  %299 = vst [vmem:[#allocation2 + $0x50] sm:$0xff] %v283
  %300 = vst [vmem:[#allocation2 + $0x58] sm:$0xff] %v284
  %301 = vst [vmem:[#allocation2 + $0x60] sm:$0xff] %v285
  %302 = vst [vmem:[#allocation2 + $0x68] sm:$0xff] %v286
  %303 = vst [vmem:[#allocation2 + $0x70] sm:$0xff] %v287
  %304 = vst [vmem:[#allocation2 + $0x78] sm:$0xff] %v288
  // Predicated region
  $region14: #{hgnn_embedding_forward.7} parent=0 // pred_check
    %p305 = pneg %p12
  $region15: #{hgnn_embedding_forward.7} parent=0 // pred_check_branch
    %307 = sbr.rel (%p305) target = $region17
  $region16: #{hgnn_embedding_forward.7} parent=0 // pred_region
    %v308 = vld [vmem:[#allocation2] sm:$0xff]
    %v309 = vld [vmem:[#allocation2 + $0x8] sm:$0xff]
    %v310 = vld [vmem:[#allocation2 + $0x10] sm:$0xff]
    %v311 = vld [vmem:[#allocation2 + $0x18] sm:$0xff]
    %v312 = vld [vmem:[#allocation2 + $0x20] sm:$0xff]
    %v313 = vld [vmem:[#allocation2 + $0x28] sm:$0xff]
    %v314 = vld [vmem:[#allocation2 + $0x30] sm:$0xff]
    %v315 = vld [vmem:[#allocation2 + $0x38] sm:$0xff]
    %v316 = vld [vmem:[#allocation2 + $0x40] sm:$0xff]
    %v317 = vld [vmem:[#allocation2 + $0x48] sm:$0xff]
    %v318 = vld [vmem:[#allocation2 + $0x50] sm:$0xff]
    %v319 = vld [vmem:[#allocation2 + $0x58] sm:$0xff]
    %v320 = vld [vmem:[#allocation2 + $0x60] sm:$0xff]
    %v321 = vld [vmem:[#allocation2 + $0x68] sm:$0xff]
    %v322 = vld [vmem:[#allocation2 + $0x70] sm:$0xff]
    %v323 = vld [vmem:[#allocation2 + $0x78] sm:$0xff]
    %v324 = vmax.f32 %v308, 0.0
    %v325 = vmax.f32 %v309, 0.0
    %v326 = vmax.f32 %v310, 0.0
    %v327 = vmax.f32 %v311, 0.0
    %v328 = vmax.f32 %v312, 0.0
    %v329 = vmax.f32 %v313, 0.0
    %v330 = vmax.f32 %v314, 0.0
    %v331 = vmax.f32 %v315, 0.0
    %v332 = vmax.f32 %v316, 0.0
    %v333 = vmax.f32 %v317, 0.0
    %v334 = vmax.f32 %v318, 0.0
    %v335 = vmax.f32 %v319, 0.0
    %v336 = vmax.f32 %v320, 0.0
    %v337 = vmax.f32 %v321, 0.0
    %v338 = vmax.f32 %v322, 0.0
    %v339 = vmax.f32 %v323, 0.0
    %340 = vst [vmem:[%s2] sm:$0xff] %v324
    %341 = vst [vmem:[%s2 + $0x8] sm:$0xff] %v325
    %342 = vst [vmem:[%s2 + $0x10] sm:$0xff] %v326
    %343 = vst [vmem:[%s2 + $0x18] sm:$0xff] %v327
    %344 = vst [vmem:[%s2 + $0x20] sm:$0xff] %v328
    %345 = vst [vmem:[%s2 + $0x28] sm:$0xff] %v329
    %346 = vst [vmem:[%s2 + $0x30] sm:$0xff] %v330
    %347 = vst [vmem:[%s2 + $0x38] sm:$0xff] %v331
    %348 = vst [vmem:[%s2 + $0x40] sm:$0xff] %v332
    %349 = vst [vmem:[%s2 + $0x48] sm:$0xff] %v333
    %350 = vst [vmem:[%s2 + $0x50] sm:$0xff] %v334
    %351 = vst [vmem:[%s2 + $0x58] sm:$0xff] %v335
    %352 = vst [vmem:[%s2 + $0x60] sm:$0xff] %v336
    %353 = vst [vmem:[%s2 + $0x68] sm:$0xff] %v337
    %354 = vst [vmem:[%s2 + $0x70] sm:$0xff] %v338
    %355 = vst [vmem:[%s2 + $0x78] sm:$0xff] %v339
  $region17: #{hgnn_embedding_forward.7} parent=0 // pred_fallthru
    _
  // Predicated region
  $region18: #{hgnn_embedding_forward.7} parent=0 // pred_check
    _
  $region19: #{hgnn_embedding_forward.7} parent=0 // pred_check_branch
    %357 = sbr.rel (0) target = $region21
  $region20: #{hgnn_embedding_forward.7} parent=0 // pred_region
    _
  $region21: #{hgnn_embedding_forward.7} parent=0 // pred_fallthru
    _
  // Predicated region
  $region22: #{hgnn_embedding_forward.7} parent=0 // pred_check
    _
  $region23: #{hgnn_embedding_forward.7} parent=0 // pred_check_branch
    %359 = sbr.rel (0) target = $region25
  $region24: #{hgnn_embedding_forward.7} parent=0 // pred_region
    _
  $region25: #{hgnn_embedding_forward.7} parent=0 // pred_fallthru
    _

// kernel: hgnn_embedding_forward.4
$region0: #{hgnn_embedding_forward.4}
  #allocation0 [shape = 'u32[]', space=smem, size = 0x4, offset = 0x4, fixed_abs, tag = 'smem constant byte address 0x4 - core index']
  #allocation1 [shape = 'u32[144,128]{1,0:T(1,128)}', space=vmem, size = 0x12000, scoped, tag = 'internal scratch']
  #allocation2 [shape = 'f32[128,128]{1,0:T(8,128)}', space=vmem, size = 0x10000, scoped, tag = 'scratch operand']
  %s0 = inlined_call_operand.vmem [shape: bf16[128,128], index: 0, kind: input, shape index: {}]
  %s1 = inlined_call_operand.vmem [shape: bf16[128,128], index: 1, kind: input, shape index: {}]
  %s2 = inlined_call_operand.vmem [shape: f32[1,128], index: 2, kind: input, shape index: {}]
  %s3 = inlined_call_operand.vmem [shape: bf16[128,128], index: 3, kind: output, shape index: {}]
  %s4 = sld [smem:[#allocation0]]
  $region30: #{hgnn_embedding_forward.4} parent=0
    _
  %s6 = ssub.s32 1, %s4
  %s7 = scalar_select 0, %s6, %s4
  // Predicated region
  $region2: #{hgnn_embedding_forward.4} parent=0 // pred_check
    _
  $region3: #{hgnn_embedding_forward.4} parent=0 // pred_check_branch
    %9 = sbr.rel (0) target = $region5
  $region4: #{hgnn_embedding_forward.4} parent=0 // pred_region
    _
  $region5: #{hgnn_embedding_forward.4} parent=0 // pred_fallthru
    _
  // Predicated region
  $region6: #{hgnn_embedding_forward.4} parent=0 // pred_check
    _
  $region7: #{hgnn_embedding_forward.4} parent=0 // pred_check_branch
    %11 = sbr.rel (0) target = $region9
  $region8: #{hgnn_embedding_forward.4} parent=0 // pred_region
    _
  $region9: #{hgnn_embedding_forward.4} parent=0 // pred_fallthru
    _
  // Predicated region
  $region10: #{hgnn_embedding_forward.4} parent=0 // pred_check
    _
  $region11: #{hgnn_embedding_forward.4} parent=0 // pred_check_branch
    %13 = sbr.rel (0) target = $region13
  $region12: #{hgnn_embedding_forward.4} parent=0 // pred_region
    _
  $region13: #{hgnn_embedding_forward.4} parent=0 // pred_fallthru
    _
  %p15 = scmp.eq.s32.totalorder 0, 0
  // Predicated region
  $region14: #{hgnn_embedding_forward.4} parent=0 // pred_check
    %p16 = pneg %p15
  $region15: #{hgnn_embedding_forward.4} parent=0 // pred_check_branch
    %18 = sbr.rel (%p16) target = $region17
  $region16: #{hgnn_embedding_forward.4} parent=0 // pred_region
    %19 = vst [vmem:[#allocation2] sm:$0xff] 0.0
    %20 = vst [vmem:[#allocation2 + $0x8] sm:$0xff] 0.0
    %21 = vst [vmem:[#allocation2 + $0x10] sm:$0xff] 0.0
    %22 = vst [vmem:[#allocation2 + $0x18] sm:$0xff] 0.0
    %23 = vst [vmem:[#allocation2 + $0x20] sm:$0xff] 0.0
    %24 = vst [vmem:[#allocation2 + $0x28] sm:$0xff] 0.0
    %25 = vst [vmem:[#allocation2 + $0x30] sm:$0xff] 0.0
    %26 = vst [vmem:[#allocation2 + $0x38] sm:$0xff] 0.0
    %27 = vst [vmem:[#allocation2 + $0x40] sm:$0xff] 0.0
    %28 = vst [vmem:[#allocation2 + $0x48] sm:$0xff] 0.0
    %29 = vst [vmem:[#allocation2 + $0x50] sm:$0xff] 0.0
    %30 = vst [vmem:[#allocation2 + $0x58] sm:$0xff] 0.0
    %31 = vst [vmem:[#allocation2 + $0x60] sm:$0xff] 0.0
    %32 = vst [vmem:[#allocation2 + $0x68] sm:$0xff] 0.0
    %33 = vst [vmem:[#allocation2 + $0x70] sm:$0xff] 0.0
    %34 = vst [vmem:[#allocation2 + $0x78] sm:$0xff] 0.0
  $region17: #{hgnn_embedding_forward.4} parent=0 // pred_fallthru
    _
  %v35 = vld [vmem:[#allocation2] sm:$0xff]
  %v36 = vld [vmem:[#allocation2 + $0x8] sm:$0xff]
  %v37 = vld [vmem:[#allocation2 + $0x10] sm:$0xff]
  %v38 = vld [vmem:[#allocation2 + $0x18] sm:$0xff]
  %v39 = vld [vmem:[#allocation2 + $0x20] sm:$0xff]
  %v40 = vld [vmem:[#allocation2 + $0x28] sm:$0xff]
  %v41 = vld [vmem:[#allocation2 + $0x30] sm:$0xff]
  %v42 = vld [vmem:[#allocation2 + $0x38] sm:$0xff]
  %v43 = vld [vmem:[#allocation2 + $0x40] sm:$0xff]
  %v44 = vld [vmem:[#allocation2 + $0x48] sm:$0xff]
  %v45 = vld [vmem:[#allocation2 + $0x50] sm:$0xff]
  %v46 = vld [vmem:[#allocation2 + $0x58] sm:$0xff]
  %v47 = vld [vmem:[#allocation2 + $0x60] sm:$0xff]
  %v48 = vld [vmem:[#allocation2 + $0x68] sm:$0xff]
  %v49 = vld [vmem:[#allocation2 + $0x70] sm:$0xff]
  %v50 = vld [vmem:[#allocation2 + $0x78] sm:$0xff]
  %v51 = vld [vmem:[%s0] sm:$0xf]
  %v52 = vld [vmem:[%s0 + $0x4] sm:$0xf]
  %v53 = vld [vmem:[%s0 + $0x8] sm:$0xf]
  %v54 = vld [vmem:[%s0 + $0xc] sm:$0xf]
  %v55 = vld [vmem:[%s0 + $0x10] sm:$0xf]
  %v56 = vld [vmem:[%s0 + $0x14] sm:$0xf]
  %v57 = vld [vmem:[%s0 + $0x18] sm:$0xf]
  %v58 = vld [vmem:[%s0 + $0x1c] sm:$0xf]
  %v59 = vld [vmem:[%s0 + $0x20] sm:$0xf]
  %v60 = vld [vmem:[%s0 + $0x24] sm:$0xf]
  %v61 = vld [vmem:[%s0 + $0x28] sm:$0xf]
  %v62 = vld [vmem:[%s0 + $0x2c] sm:$0xf]
  %v63 = vld [vmem:[%s0 + $0x30] sm:$0xf]
  %v64 = vld [vmem:[%s0 + $0x34] sm:$0xf]
  %v65 = vld [vmem:[%s0 + $0x38] sm:$0xf]
  %v66 = vld [vmem:[%s0 + $0x3c] sm:$0xf]
  %v67 = vld [vmem:[%s1] sm:$0xf]
  %v68 = vld [vmem:[%s1 + $0x4] sm:$0xf]
  %v69 = vld [vmem:[%s1 + $0x8] sm:$0xf]
  %v70 = vld [vmem:[%s1 + $0xc] sm:$0xf]
  %v71 = vld [vmem:[%s1 + $0x10] sm:$0xf]
  %v72 = vld [vmem:[%s1 + $0x14] sm:$0xf]
  %v73 = vld [vmem:[%s1 + $0x18] sm:$0xf]
  %v74 = vld [vmem:[%s1 + $0x1c] sm:$0xf]
  %v75 = vld [vmem:[%s1 + $0x20] sm:$0xf]
  %v76 = vld [vmem:[%s1 + $0x24] sm:$0xf]
  %v77 = vld [vmem:[%s1 + $0x28] sm:$0xf]
  %v78 = vld [vmem:[%s1 + $0x2c] sm:$0xf]
  %v79 = vld [vmem:[%s1 + $0x30] sm:$0xf]
  %v80 = vld [vmem:[%s1 + $0x34] sm:$0xf]
  %v81 = vld [vmem:[%s1 + $0x38] sm:$0xf]
  %v82 = vld [vmem:[%s1 + $0x3c] sm:$0xf]
  %v99 = vunpack.c.l.b16 %v51
  %v100 = vunpack.c.l.b16 %v52
  %v101 = vunpack.c.l.b16 %v53
  %v102 = vunpack.c.l.b16 %v54
  %v103 = vunpack.c.l.b16 %v55
  %v104 = vunpack.c.l.b16 %v56
  %v105 = vunpack.c.l.b16 %v57
  %v106 = vunpack.c.l.b16 %v58
  %v107 = vunpack.c.l.b16 %v59
  %v108 = vunpack.c.l.b16 %v60
  %v109 = vunpack.c.l.b16 %v61
  %v110 = vunpack.c.l.b16 %v62
  %v111 = vunpack.c.l.b16 %v63
  %v112 = vunpack.c.l.b16 %v64
  %v113 = vunpack.c.l.b16 %v65
  %v114 = vunpack.c.l.b16 %v66
  %v115 = vpack.c.b16 %v100, %v99
  %v116 = vpack.c.b16 %v102, %v101
  %v117 = vpack.c.b16 %v104, %v103
  %v118 = vpack.c.b16 %v106, %v105
  %v119 = vpack.c.b16 %v108, %v107
  %v120 = vpack.c.b16 %v110, %v109
  %v121 = vpack.c.b16 %v112, %v111
  %v122 = vpack.c.b16 %v114, %v113
  %v147 = vunpack.c.l.b16 %v67
  %v148 = vunpack.c.l.b16 %v68
  %v149 = vunpack.c.l.b16 %v69
  %v150 = vunpack.c.l.b16 %v70
  %v151 = vunpack.c.l.b16 %v71
  %v152 = vunpack.c.l.b16 %v72
  %v153 = vunpack.c.l.b16 %v73
  %v154 = vunpack.c.l.b16 %v74
  %v155 = vunpack.c.l.b16 %v75
  %v156 = vunpack.c.l.b16 %v76
  %v157 = vunpack.c.l.b16 %v77
  %v158 = vunpack.c.l.b16 %v78
  %v159 = vunpack.c.l.b16 %v79
  %v160 = vunpack.c.l.b16 %v80
  %v161 = vunpack.c.l.b16 %v81
  %v162 = vunpack.c.l.b16 %v82
  %v163 = vpack.c.b16 %v148, %v147
  %v164 = vpack.c.b16 %v150, %v149
  %v165 = vpack.c.b16 %v152, %v151
  %v166 = vpack.c.b16 %v154, %v153
  %v167 = vpack.c.b16 %v156, %v155
  %v168 = vpack.c.b16 %v158, %v157
  %v169 = vpack.c.b16 %v160, %v159
  %v170 = vpack.c.b16 %v162, %v161
  %179 = vmatprep.subr.bf16.mxu0 0
  %180 = vmatpush1.bf16.msra.mxu0 %v163
  %181 = vmatprep.subr.bf16.mxu0 0
  %182 = vmatpush1.bf16.msra.mxu0 %v164
  %183 = vmatprep.subr.bf16.mxu0 0
  %184 = vmatpush1.bf16.msra.mxu0 %v165
  %185 = vmatprep.subr.bf16.mxu0 0
  %186 = vmatpush1.bf16.msra.mxu0 %v166
  %187 = vmatprep.subr.bf16.mxu0 0
  %188 = vmatpush1.bf16.msra.mxu0 %v167
  %189 = vmatprep.subr.bf16.mxu0 0
  %190 = vmatpush1.bf16.msra.mxu0 %v168
  %191 = vmatprep.subr.bf16.mxu0 0
  %192 = vmatpush1.bf16.msra.mxu0 %v169
  %193 = vmatprep.subr.bf16.mxu0 0
  %194 = vmatpush1.bf16.msra.mxu0 %v170
  %195 = vmatprep.subr.bf16.mxu0 0
  %196 = vmatpush1.bf16.msra.mxu0 0
  %197 = vmatprep.subr.bf16.mxu0 0
  %198 = vmatpush1.bf16.msra.mxu0 0
  %199 = vmatprep.subr.bf16.mxu0 0
  %200 = vmatpush1.bf16.msra.mxu0 0
  %201 = vmatprep.subr.bf16.mxu0 0
  %202 = vmatpush1.bf16.msra.mxu0 0
  %203 = vmatprep.subr.bf16.mxu0 0
  %204 = vmatpush1.bf16.msra.mxu0 0
  %205 = vmatprep.subr.bf16.mxu0 0
  %206 = vmatpush1.bf16.msra.mxu0 0
  %207 = vmatprep.subr.bf16.mxu0 0
  %208 = vmatpush1.bf16.msra.mxu0 0
  %209 = vmatprep.subr.bf16.mxu0 0
  %210 = vmatpush1.bf16.msra.mxu0 0
  %211 = vmatprep.mubr.bf16.mxu0 0
  %212 = vmatmul.mubr.bf16.gmra.mrb[0].mxu0 %v115
  %v213 = vpop.f32.mrb[0].mxu0
  %v214 = vadd.f32 0.0, %v213
  %v215 = vpop.f32.mrb[0].mxu0
  %v216 = vpop.f32.mrb[0].mxu0
  %v217 = vadd.f32 0.0, %v216
  %v218 = vpop.f32.mrb[0].mxu0
  %219 = vmatprep.mubr.bf16.mxu0 0
  %220 = vmatmul.mubr.bf16.gmra.mrb[0].mxu0 %v116
  %v221 = vpop.f32.mrb[0].mxu0
  %v222 = vadd.f32 0.0, %v221
  %v223 = vpop.f32.mrb[0].mxu0
  %v224 = vpop.f32.mrb[0].mxu0
  %v225 = vadd.f32 0.0, %v224
  %v226 = vpop.f32.mrb[0].mxu0
  %227 = vmatprep.mubr.bf16.mxu0 0
  %228 = vmatmul.mubr.bf16.gmra.mrb[0].mxu0 %v117
  %v229 = vpop.f32.mrb[0].mxu0
  %v230 = vadd.f32 0.0, %v229
  %v231 = vpop.f32.mrb[0].mxu0
  %v232 = vpop.f32.mrb[0].mxu0
  %v233 = vadd.f32 0.0, %v232
  %v234 = vpop.f32.mrb[0].mxu0
  %235 = vmatprep.mubr.bf16.mxu0 0
  %236 = vmatmul.mubr.bf16.gmra.mrb[0].mxu0 %v118
  %v237 = vpop.f32.mrb[0].mxu0
  %v238 = vadd.f32 0.0, %v237
  %v239 = vpop.f32.mrb[0].mxu0
  %v240 = vpop.f32.mrb[0].mxu0
  %v241 = vadd.f32 0.0, %v240
  %v242 = vpop.f32.mrb[0].mxu0
  %243 = vmatprep.mubr.bf16.mxu0 0
  %244 = vmatmul.mubr.bf16.gmra.mrb[0].mxu0 %v119
  %v245 = vpop.f32.mrb[0].mxu0
  %v246 = vadd.f32 0.0, %v245
  %v247 = vpop.f32.mrb[0].mxu0
  %v248 = vpop.f32.mrb[0].mxu0
  %v249 = vadd.f32 0.0, %v248
  %v250 = vpop.f32.mrb[0].mxu0
  %251 = vmatprep.mubr.bf16.mxu0 0
  %252 = vmatmul.mubr.bf16.gmra.mrb[0].mxu0 %v120
  %v253 = vpop.f32.mrb[0].mxu0
  %v254 = vadd.f32 0.0, %v253
  %v255 = vpop.f32.mrb[0].mxu0
  %v256 = vpop.f32.mrb[0].mxu0
  %v257 = vadd.f32 0.0, %v256
  %v258 = vpop.f32.mrb[0].mxu0
  %259 = vmatprep.mubr.bf16.mxu0 0
  %260 = vmatmul.mubr.bf16.gmra.mrb[0].mxu0 %v121
  %v261 = vpop.f32.mrb[0].mxu0
  %v262 = vadd.f32 0.0, %v261
  %v263 = vpop.f32.mrb[0].mxu0
  %v264 = vpop.f32.mrb[0].mxu0
  %v265 = vadd.f32 0.0, %v264
  %v266 = vpop.f32.mrb[0].mxu0
  %267 = vmatprep.mubr.bf16.mxu0 0
  %268 = vmatmul.mubr.bf16.gmra.mrb[0].mxu0 %v122
  %v269 = vpop.f32.mrb[0].mxu0
  %v270 = vadd.f32 0.0, %v269
  %v271 = vpop.f32.mrb[0].mxu0
  %v272 = vpop.f32.mrb[0].mxu0
  %v273 = vadd.f32 0.0, %v272
  %v274 = vpop.f32.mrb[0].mxu0
  %275 = vdwg.mxu0
  %v276 = vadd.f32 %v35, %v214
  %v277 = vadd.f32 %v36, %v217
  %v278 = vadd.f32 %v37, %v222
  %v279 = vadd.f32 %v38, %v225
  %v280 = vadd.f32 %v39, %v230
  %v281 = vadd.f32 %v40, %v233
  %v282 = vadd.f32 %v41, %v238
  %v283 = vadd.f32 %v42, %v241
  %v284 = vadd.f32 %v43, %v246
  %v285 = vadd.f32 %v44, %v249
  %v286 = vadd.f32 %v45, %v254
  %v287 = vadd.f32 %v46, %v257
  %v288 = vadd.f32 %v47, %v262
  %v289 = vadd.f32 %v48, %v265
  %v290 = vadd.f32 %v49, %v270
  %v291 = vadd.f32 %v50, %v273
  %292 = vst [vmem:[#allocation2] sm:$0xff] %v276
  %293 = vst [vmem:[#allocation2 + $0x8] sm:$0xff] %v277
  %294 = vst [vmem:[#allocation2 + $0x10] sm:$0xff] %v278
  %295 = vst [vmem:[#allocation2 + $0x18] sm:$0xff] %v279
  %296 = vst [vmem:[#allocation2 + $0x20] sm:$0xff] %v280
  %297 = vst [vmem:[#allocation2 + $0x28] sm:$0xff] %v281
  %298 = vst [vmem:[#allocation2 + $0x30] sm:$0xff] %v282
  %299 = vst [vmem:[#allocation2 + $0x38] sm:$0xff] %v283
  %300 = vst [vmem:[#allocation2 + $0x40] sm:$0xff] %v284
  %301 = vst [vmem:[#allocation2 + $0x48] sm:$0xff] %v285
  %302 = vst [vmem:[#allocation2 + $0x50] sm:$0xff] %v286
  %303 = vst [vmem:[#allocation2 + $0x58] sm:$0xff] %v287
  %304 = vst [vmem:[#allocation2 + $0x60] sm:$0xff] %v288
  %305 = vst [vmem:[#allocation2 + $0x68] sm:$0xff] %v289
  %306 = vst [vmem:[#allocation2 + $0x70] sm:$0xff] %v290
  %307 = vst [vmem:[#allocation2 + $0x78] sm:$0xff] %v291
  // Predicated region
  $region18: #{hgnn_embedding_forward.4} parent=0 // pred_check
    %p308 = pneg %p15
  $region19: #{hgnn_embedding_forward.4} parent=0 // pred_check_branch
    %310 = sbr.rel (%p308) target = $region21
  $region20: #{hgnn_embedding_forward.4} parent=0 // pred_region
    %v311 = vld [vmem:[#allocation2] sm:$0xff]
    %v312 = vld [vmem:[#allocation2 + $0x8] sm:$0xff]
    %v313 = vld [vmem:[#allocation2 + $0x10] sm:$0xff]
    %v314 = vld [vmem:[#allocation2 + $0x18] sm:$0xff]
    %v315 = vld [vmem:[#allocation2 + $0x20] sm:$0xff]
    %v316 = vld [vmem:[#allocation2 + $0x28] sm:$0xff]
    %v317 = vld [vmem:[#allocation2 + $0x30] sm:$0xff]
    %v318 = vld [vmem:[#allocation2 + $0x38] sm:$0xff]
    %v319 = vld [vmem:[#allocation2 + $0x40] sm:$0xff]
    %v320 = vld [vmem:[#allocation2 + $0x48] sm:$0xff]
    %v321 = vld [vmem:[#allocation2 + $0x50] sm:$0xff]
    %v322 = vld [vmem:[#allocation2 + $0x58] sm:$0xff]
    %v323 = vld [vmem:[#allocation2 + $0x60] sm:$0xff]
    %v324 = vld [vmem:[#allocation2 + $0x68] sm:$0xff]
    %v325 = vld [vmem:[#allocation2 + $0x70] sm:$0xff]
    %v326 = vld [vmem:[#allocation2 + $0x78] sm:$0xff]
    %v327 = vld [vmem:[%s2] sm:$0x1]
    %v329 = vlaneseq
    %v330 = vshrl.u32 %v329, 7
    %v331 = vsub.s32 0, %v330
    %v332 = vrot.slane %v327, %v331
    %v334 = vadd.f32 %v311, %v332
    %v335 = vadd.f32 %v312, %v332
    %v336 = vadd.f32 %v313, %v332
    %v337 = vadd.f32 %v314, %v332
    %v338 = vadd.f32 %v315, %v332
    %v339 = vadd.f32 %v316, %v332
    %v340 = vadd.f32 %v317, %v332
    %v341 = vadd.f32 %v318, %v332
    %v342 = vadd.f32 %v319, %v332
    %v343 = vadd.f32 %v320, %v332
    %v344 = vadd.f32 %v321, %v332
    %v345 = vadd.f32 %v322, %v332
    %v346 = vadd.f32 %v323, %v332
    %v347 = vadd.f32 %v324, %v332
    %v348 = vadd.f32 %v325, %v332
    %v349 = vadd.f32 %v326, %v332
    %v350 = vpack.c.bf16 %v335, %v334
    %v351 = vpack.c.bf16 %v337, %v336
    %v352 = vpack.c.bf16 %v339, %v338
    %v353 = vpack.c.bf16 %v341, %v340
    %v354 = vpack.c.bf16 %v343, %v342
    %v355 = vpack.c.bf16 %v345, %v344
    %v356 = vpack.c.bf16 %v347, %v346
    %v357 = vpack.c.bf16 %v349, %v348
    %v366 = vunpack.c.l.b16 %v350
    %v367 = vunpack.c.h.b16 %v350
    %v368 = vunpack.c.l.b16 %v351
    %v369 = vunpack.c.h.b16 %v351
    %v370 = vunpack.c.l.b16 %v352
    %v371 = vunpack.c.h.b16 %v352
    %v372 = vunpack.c.l.b16 %v353
    %v373 = vunpack.c.h.b16 %v353
    %v374 = vunpack.c.l.b16 %v354
    %v375 = vunpack.c.h.b16 %v354
    %v376 = vunpack.c.l.b16 %v355
    %v377 = vunpack.c.h.b16 %v355
    %v378 = vunpack.c.l.b16 %v356
    %v379 = vunpack.c.h.b16 %v356
    %v380 = vunpack.c.l.b16 %v357
    %v381 = vunpack.c.h.b16 %v357
    %v382 = vpack.c.b16 %v366, %v366
    %v383 = vpack.c.b16 %v367, %v367
    %v384 = vpack.c.b16 %v368, %v368
    %v385 = vpack.c.b16 %v369, %v369
    %v386 = vpack.c.b16 %v370, %v370
    %v387 = vpack.c.b16 %v371, %v371
    %v388 = vpack.c.b16 %v372, %v372
    %v389 = vpack.c.b16 %v373, %v373
    %v390 = vpack.c.b16 %v374, %v374
    %v391 = vpack.c.b16 %v375, %v375
    %v392 = vpack.c.b16 %v376, %v376
    %v393 = vpack.c.b16 %v377, %v377
    %v394 = vpack.c.b16 %v378, %v378
    %v395 = vpack.c.b16 %v379, %v379
    %v396 = vpack.c.b16 %v380, %v380
    %v397 = vpack.c.b16 %v381, %v381
    %414 = vst [vmem:[%s3] sm:$0xf] %v382
    %415 = vst [vmem:[%s3 + $0x4] sm:$0xf] %v383
    %416 = vst [vmem:[%s3 + $0x8] sm:$0xf] %v384
    %417 = vst [vmem:[%s3 + $0xc] sm:$0xf] %v385
    %418 = vst [vmem:[%s3 + $0x10] sm:$0xf] %v386
    %419 = vst [vmem:[%s3 + $0x14] sm:$0xf] %v387
    %420 = vst [vmem:[%s3 + $0x18] sm:$0xf] %v388
    %421 = vst [vmem:[%s3 + $0x1c] sm:$0xf] %v389
    %422 = vst [vmem:[%s3 + $0x20] sm:$0xf] %v390
    %423 = vst [vmem:[%s3 + $0x24] sm:$0xf] %v391
    %424 = vst [vmem:[%s3 + $0x28] sm:$0xf] %v392
    %425 = vst [vmem:[%s3 + $0x2c] sm:$0xf] %v393
    %426 = vst [vmem:[%s3 + $0x30] sm:$0xf] %v394
    %427 = vst [vmem:[%s3 + $0x34] sm:$0xf] %v395
    %428 = vst [vmem:[%s3 + $0x38] sm:$0xf] %v396
    %429 = vst [vmem:[%s3 + $0x3c] sm:$0xf] %v397
  $region21: #{hgnn_embedding_forward.4} parent=0 // pred_fallthru
    _
  // Predicated region
  $region22: #{hgnn_embedding_forward.4} parent=0 // pred_check
    _
  $region23: #{hgnn_embedding_forward.4} parent=0 // pred_check_branch
    %431 = sbr.rel (0) target = $region25
  $region24: #{hgnn_embedding_forward.4} parent=0 // pred_region
    _
  $region25: #{hgnn_embedding_forward.4} parent=0 // pred_fallthru
    _
  // Predicated region
  $region26: #{hgnn_embedding_forward.4} parent=0 // pred_check
    _
  $region27: #{hgnn_embedding_forward.4} parent=0 // pred_check_branch
    %433 = sbr.rel (0) target = $region29
  $region28: #{hgnn_embedding_forward.4} parent=0 // pred_region
    _
  $region29: #{hgnn_embedding_forward.4} parent=0 // pred_fallthru
    _

</llo_original>
